<compile_context>
chip_gen: v5e
topology: v5e:2x2
jax: 0.10.0
libtpu: 0.0.40
codegen_flags: <defaults>
</compile_context>

<pallas_src>
import functools
import math

import numpy as np
import jax
import jax.numpy as jnp
from jax.experimental import pallas as pl
from jax.experimental.pallas import tpu as pltpu

KSIZE = 12          # anti-alias filter taps (Activation1d default, ratio=2)
RATIO = 2
CONV_K = 3          # ResBlock3 Conv1d kernel size
DILATIONS = (1, 3)
NO_DIV = 1e-9

# Feed the conv matmul in bf16 (f32 accumulation).  ~3x MXU throughput on
# v6e/v7x at production C; re-validate tolerances before enabling.
MXU_BF16 = False


# ----------------------------------------------------------------------------
# Host-side constant construction (glue): kaiser-sinc anti-alias filter.
# ----------------------------------------------------------------------------
def kaiser_sinc_filter1d(cutoff, half_width, kernel_size):
    even = kernel_size % 2 == 0
    half_size = kernel_size // 2
    delta_f = 4 * half_width
    A = 2.285 * (half_size - 1) * math.pi * delta_f + 7.95
    if A > 50.0:
        beta_k = 0.1102 * (A - 8.7)
    elif A >= 21.0:
        beta_k = 0.5842 * (A - 21) ** 0.4 + 0.07886 * (A - 21.0)
    else:
        beta_k = 0.0
    window = np.kaiser(kernel_size, beta_k)          # == torch periodic=False
    if even:
        t = np.arange(-half_size, half_size) + 0.5
    else:
        t = np.arange(kernel_size) - half_size
    filt = 2 * cutoff * window * np.sinc(2 * cutoff * t)   # np.sinc == torch.sinc
    filt = filt / filt.sum()
    return filt.astype(np.float64)


# ----------------------------------------------------------------------------
# Pallas kernel: two residual layers of (anti-aliased SnakeBeta -> dilated conv)
# for ONE batch element (grid step).
# ----------------------------------------------------------------------------
def resblock3_kernel(x_ref, a_ref, be_ref, w_ref, b_ref, o_ref, *,
                     taps, dilations, mxu_bf16):
    # Block shapes: x_ref/o_ref (1, C, T); a_ref/be_ref (C, 1);
    #               w_ref (2, C, 3C); b_ref (2, C, 1).
    _, C, T = x_ref.shape
    x = x_ref[...]

    # SnakeBeta parameters (alpha_logscale=True -> stored in log space), shared
    # by both layers (ResBlock3 has a single Activation1d).  Hoisted once.
    exp_a = jnp.exp(a_ref[...])[None]                      # (1, C, 1)
    inv_b = (1.0 / (jnp.exp(be_ref[...]) + NO_DIV))[None]  # (1, C, 1)

    for layer, d in enumerate(dilations):
        # --- UpSample1d: replicate pad(5,5) + conv_transpose(stride=2, 12 taps)
        #     * ratio + crop[15:-15], written in polyphase form:
        #       up[2u]   = 2 * sum_m f[2m+1] * x_pad[u + 7 - m]
        #       up[2u+1] = 2 * sum_m f[2m]   * x_pad[u + 8 - m]
        left = jnp.broadcast_to(x[..., :1], (1, C, 5))
        right = jnp.broadcast_to(x[..., -1:], (1, C, 5))
        xp = jnp.concatenate([left, x, right], axis=-1)          # (1, C, T+10)
        # Hoist the 7 distinct shifted windows (lane offsets 2..8, length T);
        # 5 of them are shared between the even and odd accumulation chains.
        win = {o: xp[..., o:o + T] for o in range(2, 9)}
        ev = (2.0 * taps[1]) * win[7]                            # even phase
        od = (2.0 * taps[0]) * win[8]                            # odd phase
        for m in range(1, 6):
            ev = ev + (2.0 * taps[2 * m + 1]) * win[7 - m]
            od = od + (2.0 * taps[2 * m]) * win[8 - m]

        # --- SnakeBeta: v + 1/b * sin^2(a * v), per polyphase component.
        se = jnp.sin(ev * exp_a)
        so = jnp.sin(od * exp_a)
        ae = ev + inv_b * se * se                                # act(up)[2u]
        ao = od + inv_b * so * so                                # act(up)[2u+1]

        # --- DownSample1d: replicate pad(5,6) + 12-tap conv, stride 2, again in
        #     polyphase form over the activated (even, odd) components:
        #       y[t] = sum_m f[2m+1]*E_ext[t+m-2] + f[2m]*O_ext[t+m-3]
        #     where E_ext/O_ext are padded with act(up)[0] / act(up)[2T-1].
        ee = jnp.concatenate(
            [jnp.broadcast_to(ae[..., :1], (1, C, 2)), ae,
             jnp.broadcast_to(ao[..., -1:], (1, C, 3))], axis=-1)   # (1, C, T+5)
        oe = jnp.concatenate(
            [jnp.broadcast_to(ae[..., :1], (1, C, 3)), ao,
             jnp.broadcast_to(ao[..., -1:], (1, C, 2))], axis=-1)   # (1, C, T+5)
        y = taps[1] * ee[..., :T] + taps[0] * oe[..., :T]
        for m in range(1, 6):
            y = y + taps[2 * m + 1] * ee[..., m:m + T] + taps[2 * m] * oe[..., m:m + T]

        # --- Conv1d(C, C, 3, dilation=d, padding=d): time shifts as zero-filled
        #     static lane slices, all three taps fused into a single MXU matmul
        #     per grid step:  conv = [W0|W1|W2] @ [y(t-d); y(t); y(t+d)]
        y2 = y[0]                                                # (C, T)
        zpad = jnp.zeros((C, d), jnp.float32)
        y_m = jnp.concatenate([zpad, y2[:, :T - d]], axis=-1)    # y(t-d)
        y_p = jnp.concatenate([y2[:, d:], zpad], axis=-1)        # y(t+d)
        ycat = jnp.concatenate([y_m, y2, y_p], axis=0)           # (3C, T)
        w_l = w_ref[layer]                                       # (C, 3C)
        b_l = b_ref[layer]                                       # (C, 1)
        if mxu_bf16:
            conv = jnp.dot(w_l.astype(jnp.bfloat16), ycat.astype(jnp.bfloat16),
                           preferred_element_type=jnp.float32) + b_l
        else:
            conv = jnp.dot(w_l, ycat, preferred_element_type=jnp.float32) + b_l
        x = x + conv[None]                                       # residual add

    o_ref[...] = x


def resblock3_forward(x, alpha2d, beta2d, w_cat, bias, filt, *, mxu_bf16=MXU_BF16):
    B, C, T = x.shape
    taps = tuple(float(v) for v in np.asarray(filt))
    kernel = functools.partial(resblock3_kernel, taps=taps,
                               dilations=DILATIONS, mxu_bf16=mxu_bf16)

    grid_spec = pltpu.PrefetchScalarGridSpec(
        num_scalar_prefetch=0,
        grid=(B,),
        in_specs=[
            pl.BlockSpec((1, C, T), lambda b: (b, 0, 0)),        # x
            pl.BlockSpec((C, 1), lambda b: (0, 0)),              # log-alpha
            pl.BlockSpec((C, 1), lambda b: (0, 0)),              # log-beta
            pl.BlockSpec((2, C, 3 * C), lambda b: (0, 0, 0)),    # packed conv W
            pl.BlockSpec((2, C, 1), lambda b: (0, 0, 0)),        # conv bias
        ],
        out_specs=pl.BlockSpec((1, C, T), lambda b: (b, 0, 0)),
    )

    # Advisory cost estimate for XLA scheduling around the custom call.
    flops = int(2 * B * (85 * C * T + 6 * C * C * T))
    transcendentals = int(4 * B * C * T)
    bytes_accessed = int(4 * (2 * B * C * T + 2 * C + 6 * C * C + 2 * C))

    # Per-step working set is O(C*T) (tens of live (C,T) f32 intermediates) plus
    # the double-buffered operands.  Cap at 56 MiB so the same setting is legal
    # on v7x (64 MiB physical VMEM) as well as v5e/v6e (128 MiB).
    per_step_bytes = 48 * C * T * 4 + 2 * (6 * C * C + 4 * C) * 4
    vmem_limit = int(min(56 * 2**20, max(32 * 2**20, 2 * per_step_bytes)))

    return pl.pallas_call(
        kernel,
        out_shape=jax.ShapeDtypeStruct((B, C, T), jnp.float32),
        grid_spec=grid_spec,
        compiler_params=pltpu.CompilerParams(
            dimension_semantics=("parallel",),
            vmem_limit_bytes=vmem_limit),
        cost_estimate=pl.CostEstimate(flops=flops,
                                      transcendentals=transcendentals,
                                      bytes_accessed=bytes_accessed),
    )(x, alpha2d, beta2d, w_cat, bias)


# ----------------------------------------------------------------------------
# Independent numpy reference (direct PyTorch semantics) for validation.
# ----------------------------------------------------------------------------
def ref_forward_np(x, f, alpha, beta, Ws, bs, dils):
    B, C, T = x.shape
    exp_a = np.exp(alpha)[None, :, None]
    inv_b = 1.0 / (np.exp(beta)[None, :, None] + NO_DIV)
    K = len(f)

    def replicate_pad(v, p_l, p_r):
        left = np.repeat(v[..., :1], p_l, axis=-1)
        right = np.repeat(v[..., -1:], p_r, axis=-1)
        return np.concatenate([left, v, right], axis=-1)

    def upsample(v):
        vp = replicate_pad(v, 5, 5)
        Lp = vp.shape[-1]
        Lf = RATIO * (Lp - 1) + K
        y = np.zeros((B, C, Lf))
        for j in range(Lp):
            for k in range(K):
                y[..., RATIO * j + k] += vp[..., j] * f[k]
        y = RATIO * y
        return y[..., 15:Lf - 15]

    def downsample(v):
        vp = replicate_pad(v, 5, 6)
        Lo = (vp.shape[-1] - K) // RATIO + 1
        y = np.zeros((B, C, Lo))
        for t in range(Lo):
            y[..., t] = (vp[..., RATIO * t:RATIO * t + K] * f).sum(-1)
        return y

    def snakebeta(v):
        return v + inv_b * np.sin(v * exp_a) ** 2

    def conv1d(v, W, b, d):
        vp = np.pad(v, ((0, 0), (0, 0), (d, d)))
        out = np.zeros((B, C, T))
        for t in range(T):
            window = np.stack([vp[..., t], vp[..., t + d], vp[..., t + 2 * d]], axis=-1)
            out[..., t] = np.einsum('oik,bik->bo', W, window) + b
        return out

    out = x.astype(np.float64).copy()
    for li in range(2):
        xt = downsample(snakebeta(upsample(out)))
        xt = conv1d(xt, Ws[li], bs[li], dils[li])
        out = out + xt
    return out


# ----------------------------------------------------------------------------
if __name__ == "__main__":
    # Lane/sublane-dense demo shape: T multiple of 128, C multiple of 8.
    B, C, T = 2, 8, 128

    key = jax.random.PRNGKey(0)
    kx, ka, kb, kw0, kw1, kb0, kb1 = jax.random.split(key, 7)

    x = jax.random.normal(kx, (B, C, T), dtype=jnp.float32)

    # SnakeBeta parameters (alpha_logscale=True -> stored in log space).
    alpha = (0.1 * jax.random.normal(ka, (C,))).astype(jnp.float32)
    beta = (0.1 * jax.random.normal(kb, (C,))).astype(jnp.float32)

    # Conv1d weights: init_weights -> normal(0, 0.01); weight_norm is identity at init.
    W0 = (0.01 * jax.random.normal(kw0, (C, C, CONV_K))).astype(jnp.float32)
    W1 = (0.01 * jax.random.normal(kw1, (C, C, CONV_K))).astype(jnp.float32)
    b0 = (0.05 * jax.random.normal(kb0, (C,))).astype(jnp.float32)
    b1 = (0.05 * jax.random.normal(kb1, (C,))).astype(jnp.float32)

    # Anti-alias kaiser-sinc filter (same for up & down at ratio=2, kernel 12).
    f = kaiser_sinc_filter1d(cutoff=0.5 / RATIO, half_width=0.6 / RATIO,
                             kernel_size=KSIZE)

    # Pack conv weights tap-fused: (layer, C_out, 3*C_in) = [W_k0 | W_k1 | W_k2],
    # matching the [y(t-d); y(t); y(t+d)] stacking inside the kernel.
    def pack(W):
        return jnp.concatenate([W[:, :, k] for k in range(CONV_K)], axis=1)

    w_cat = jnp.stack([pack(W0), pack(W1)])             # (2, C, 3C)
    bias = jnp.stack([b0[:, None], b1[:, None]])        # (2, C, 1)

    out = resblock3_forward(x, alpha[:, None], beta[:, None], w_cat, bias, f)
    out = jax.block_until_ready(out)

    # Validate against a direct (unfused) numpy implementation of the module.
    ref = ref_forward_np(np.asarray(x), np.asarray(f),
                         np.asarray(alpha), np.asarray(beta),
                         [np.asarray(W0), np.asarray(W1)],
                         [np.asarray(b0), np.asarray(b1)],
                         DILATIONS)
    np.testing.assert_allclose(np.asarray(out), ref, rtol=1e-3, atol=1e-4)

    print("KERNEL_OK")
</pallas_src>

<mosaic_0001>
module attributes {stable_mosaic.version = 11 : i64} {
  func.func @resblock3_kernel(%arg0: i32, %arg1: memref<1x8x128xf32, #tpu.memory_space<vmem>>, %arg2: memref<8x1xf32, #tpu.memory_space<vmem>>, %arg3: memref<8x1xf32, #tpu.memory_space<vmem>>, %arg4: memref<2x8x24xf32, #tpu.memory_space<vmem>>, %arg5: memref<2x8x1xf32, #tpu.memory_space<vmem>>, %arg6: memref<1x8x128xf32, #tpu.memory_space<vmem>>) attributes {dimension_semantics = [#tpu.dimension_semantics<parallel>], iteration_bounds = array<i64: 2>, scalar_prefetch = 0 : i64, scratch_operands = 0 : i64, tpu.core_type = #tpu.core_type<tc>, window_params = [{transform_indices = @transform_0, window_bounds = array<i64: 1, 8, 128>}, {pipeline_mode = #tpu.pipeline_mode<synchronous>, transform_indices = @transform_1, window_bounds = array<i64: 8, 1>}, {pipeline_mode = #tpu.pipeline_mode<synchronous>, transform_indices = @transform_2, window_bounds = array<i64: 8, 1>}, {pipeline_mode = #tpu.pipeline_mode<synchronous>, transform_indices = @transform_3, window_bounds = array<i64: 2, 8, 24>}, {pipeline_mode = #tpu.pipeline_mode<synchronous>, transform_indices = @transform_4, window_bounds = array<i64: 2, 8, 1>}, {transform_indices = @transform_5, window_bounds = array<i64: 1, 8, 128>}]} {
    %c0 = arith.constant 0 : index
    %c0_0 = arith.constant 0 : index
    %c0_1 = arith.constant 0 : index
    %0 = vector.load %arg1[%c0, %c0_0, %c0_1] : memref<1x8x128xf32, #tpu.memory_space<vmem>>, vector<1x8x128xf32>
    %c0_2 = arith.constant 0 : index
    %c0_3 = arith.constant 0 : index
    %1 = vector.load %arg2[%c0_2, %c0_3] : memref<8x1xf32, #tpu.memory_space<vmem>>, vector<8x1xf32>
    %2 = math.exp %1 : vector<8x1xf32>
    %3 = vector.shape_cast %2 : vector<8x1xf32> to vector<1x8x1xf32>
    %c0_4 = arith.constant 0 : index
    %c0_5 = arith.constant 0 : index
    %4 = vector.load %arg3[%c0_4, %c0_5] : memref<8x1xf32, #tpu.memory_space<vmem>>, vector<8x1xf32>
    %5 = math.exp %4 : vector<8x1xf32>
    %cst = arith.constant 9.99999971E-10 : f32
    %6 = vector.broadcast %cst : f32 to vector<8x1xf32>
    %7 = arith.addf %5, %6 : vector<8x1xf32>
    %cst_6 = arith.constant 1.000000e+00 : f32
    %8 = vector.broadcast %cst_6 : f32 to vector<8x1xf32>
    %9 = arith.divf %8, %7 : vector<8x1xf32>
    %10 = vector.shape_cast %9 : vector<8x1xf32> to vector<1x8x1xf32>
    %11 = vector.extract_strided_slice %0 {offsets = [0, 0, 0], sizes = [1, 8, 1], strides = [1, 1, 1]} : vector<1x8x128xf32> to vector<1x8x1xf32>
    %12 = vector.shape_cast %11 : vector<1x8x1xf32> to vector<1x8x1xf32>
    %13 = vector.broadcast %12 : vector<1x8x1xf32> to vector<1x8x5xf32>
    %14 = vector.extract_strided_slice %0 {offsets = [0, 0, 127], sizes = [1, 8, 1], strides = [1, 1, 1]} : vector<1x8x128xf32> to vector<1x8x1xf32>
    %15 = vector.shape_cast %14 : vector<1x8x1xf32> to vector<1x8x1xf32>
    %16 = vector.broadcast %15 : vector<1x8x1xf32> to vector<1x8x5xf32>
    %17 = tpu.concatenate %13, %0, %16 in 2 : vector<1x8x5xf32>, vector<1x8x128xf32>, vector<1x8x5xf32> -> vector<1x8x138xf32>
    %18 = vector.extract_strided_slice %17 {offsets = [0, 0, 2], sizes = [1, 8, 128], strides = [1, 1, 1]} : vector<1x8x138xf32> to vector<1x8x128xf32>
    %19 = vector.extract_strided_slice %17 {offsets = [0, 0, 3], sizes = [1, 8, 128], strides = [1, 1, 1]} : vector<1x8x138xf32> to vector<1x8x128xf32>
    %20 = vector.extract_strided_slice %17 {offsets = [0, 0, 4], sizes = [1, 8, 128], strides = [1, 1, 1]} : vector<1x8x138xf32> to vector<1x8x128xf32>
    %21 = vector.extract_strided_slice %17 {offsets = [0, 0, 5], sizes = [1, 8, 128], strides = [1, 1, 1]} : vector<1x8x138xf32> to vector<1x8x128xf32>
    %22 = vector.extract_strided_slice %17 {offsets = [0, 0, 6], sizes = [1, 8, 128], strides = [1, 1, 1]} : vector<1x8x138xf32> to vector<1x8x128xf32>
    %23 = vector.extract_strided_slice %17 {offsets = [0, 0, 7], sizes = [1, 8, 128], strides = [1, 1, 1]} : vector<1x8x138xf32> to vector<1x8x128xf32>
    %24 = vector.extract_strided_slice %17 {offsets = [0, 0, 8], sizes = [1, 8, 128], strides = [1, 1, 1]} : vector<1x8x138xf32> to vector<1x8x128xf32>
    %cst_7 = arith.constant 0.0187789276 : f32
    %25 = vector.broadcast %cst_7 : f32 to vector<1x8x128xf32>
    %26 = arith.mulf %25, %23 : vector<1x8x128xf32>
    %cst_8 = arith.constant 0.00405793311 : f32
    %27 = vector.broadcast %cst_8 : f32 to vector<1x8x128xf32>
    %28 = arith.mulf %27, %24 : vector<1x8x128xf32>
    %cst_9 = arith.constant -0.115314752 : f32
    %29 = vector.broadcast %cst_9 : f32 to vector<1x8x128xf32>
    %30 = arith.mulf %29, %22 : vector<1x8x128xf32>
    %31 = arith.addf %26, %30 : vector<1x8x128xf32>
    %cst_10 = arith.constant -0.0510869287 : f32
    %32 = vector.broadcast %cst_10 : f32 to vector<1x8x128xf32>
    %33 = arith.mulf %32, %23 : vector<1x8x128xf32>
    %34 = arith.addf %28, %33 : vector<1x8x128xf32>
    %cst_11 = arith.constant 0.886419594 : f32
    %35 = vector.broadcast %cst_11 : f32 to vector<1x8x128xf32>
    %36 = arith.mulf %35, %21 : vector<1x8x128xf32>
    %37 = arith.addf %31, %36 : vector<1x8x128xf32>
    %cst_12 = arith.constant 0.257145226 : f32
    %38 = vector.broadcast %cst_12 : f32 to vector<1x8x128xf32>
    %39 = arith.mulf %38, %22 : vector<1x8x128xf32>
    %40 = arith.addf %34, %39 : vector<1x8x128xf32>
    %cst_13 = arith.constant 0.257145226 : f32
    %41 = vector.broadcast %cst_13 : f32 to vector<1x8x128xf32>
    %42 = arith.mulf %41, %20 : vector<1x8x128xf32>
    %43 = arith.addf %37, %42 : vector<1x8x128xf32>
    %cst_14 = arith.constant 0.886419594 : f32
    %44 = vector.broadcast %cst_14 : f32 to vector<1x8x128xf32>
    %45 = arith.mulf %44, %21 : vector<1x8x128xf32>
    %46 = arith.addf %40, %45 : vector<1x8x128xf32>
    %cst_15 = arith.constant -0.0510869287 : f32
    %47 = vector.broadcast %cst_15 : f32 to vector<1x8x128xf32>
    %48 = arith.mulf %47, %19 : vector<1x8x128xf32>
    %49 = arith.addf %43, %48 : vector<1x8x128xf32>
    %cst_16 = arith.constant -0.115314752 : f32
    %50 = vector.broadcast %cst_16 : f32 to vector<1x8x128xf32>
    %51 = arith.mulf %50, %20 : vector<1x8x128xf32>
    %52 = arith.addf %46, %51 : vector<1x8x128xf32>
    %cst_17 = arith.constant 0.00405793311 : f32
    %53 = vector.broadcast %cst_17 : f32 to vector<1x8x128xf32>
    %54 = arith.mulf %53, %18 : vector<1x8x128xf32>
    %55 = arith.addf %49, %54 : vector<1x8x128xf32>
    %cst_18 = arith.constant 0.0187789276 : f32
    %56 = vector.broadcast %cst_18 : f32 to vector<1x8x128xf32>
    %57 = arith.mulf %56, %19 : vector<1x8x128xf32>
    %58 = arith.addf %52, %57 : vector<1x8x128xf32>
    %59 = vector.broadcast %3 : vector<1x8x1xf32> to vector<1x8x128xf32>
    %60 = arith.mulf %55, %59 : vector<1x8x128xf32>
    %61 = math.sin %60 : vector<1x8x128xf32>
    %62 = vector.broadcast %3 : vector<1x8x1xf32> to vector<1x8x128xf32>
    %63 = arith.mulf %58, %62 : vector<1x8x128xf32>
    %64 = math.sin %63 : vector<1x8x128xf32>
    %65 = vector.broadcast %10 : vector<1x8x1xf32> to vector<1x8x128xf32>
    %66 = arith.mulf %65, %61 : vector<1x8x128xf32>
    %67 = arith.mulf %66, %61 : vector<1x8x128xf32>
    %68 = arith.addf %55, %67 : vector<1x8x128xf32>
    %69 = vector.broadcast %10 : vector<1x8x1xf32> to vector<1x8x128xf32>
    %70 = arith.mulf %69, %64 : vector<1x8x128xf32>
    %71 = arith.mulf %70, %64 : vector<1x8x128xf32>
    %72 = arith.addf %58, %71 : vector<1x8x128xf32>
    %73 = vector.extract_strided_slice %68 {offsets = [0, 0, 0], sizes = [1, 8, 1], strides = [1, 1, 1]} : vector<1x8x128xf32> to vector<1x8x1xf32>
    %74 = vector.shape_cast %73 : vector<1x8x1xf32> to vector<1x8x1xf32>
    %75 = vector.broadcast %74 : vector<1x8x1xf32> to vector<1x8x2xf32>
    %76 = vector.extract_strided_slice %72 {offsets = [0, 0, 127], sizes = [1, 8, 1], strides = [1, 1, 1]} : vector<1x8x128xf32> to vector<1x8x1xf32>
    %77 = vector.shape_cast %76 : vector<1x8x1xf32> to vector<1x8x1xf32>
    %78 = vector.broadcast %77 : vector<1x8x1xf32> to vector<1x8x3xf32>
    %79 = tpu.concatenate %75, %68, %78 in 2 : vector<1x8x2xf32>, vector<1x8x128xf32>, vector<1x8x3xf32> -> vector<1x8x133xf32>
    %80 = vector.extract_strided_slice %68 {offsets = [0, 0, 0], sizes = [1, 8, 1], strides = [1, 1, 1]} : vector<1x8x128xf32> to vector<1x8x1xf32>
    %81 = vector.shape_cast %80 : vector<1x8x1xf32> to vector<1x8x1xf32>
    %82 = vector.broadcast %81 : vector<1x8x1xf32> to vector<1x8x3xf32>
    %83 = vector.extract_strided_slice %72 {offsets = [0, 0, 127], sizes = [1, 8, 1], strides = [1, 1, 1]} : vector<1x8x128xf32> to vector<1x8x1xf32>
    %84 = vector.shape_cast %83 : vector<1x8x1xf32> to vector<1x8x1xf32>
    %85 = vector.broadcast %84 : vector<1x8x1xf32> to vector<1x8x2xf32>
    %86 = tpu.concatenate %82, %72, %85 in 2 : vector<1x8x3xf32>, vector<1x8x128xf32>, vector<1x8x2xf32> -> vector<1x8x133xf32>
    %87 = vector.extract_strided_slice %79 {offsets = [0, 0, 0], sizes = [1, 8, 128], strides = [1, 1, 1]} : vector<1x8x133xf32> to vector<1x8x128xf32>
    %cst_19 = arith.constant 0.00938946381 : f32
    %88 = vector.broadcast %cst_19 : f32 to vector<1x8x128xf32>
    %89 = arith.mulf %88, %87 : vector<1x8x128xf32>
    %90 = vector.extract_strided_slice %86 {offsets = [0, 0, 0], sizes = [1, 8, 128], strides = [1, 1, 1]} : vector<1x8x133xf32> to vector<1x8x128xf32>
    %cst_20 = arith.constant 0.00202896656 : f32
    %91 = vector.broadcast %cst_20 : f32 to vector<1x8x128xf32>
    %92 = arith.mulf %91, %90 : vector<1x8x128xf32>
    %93 = arith.addf %89, %92 : vector<1x8x128xf32>
    %94 = vector.extract_strided_slice %79 {offsets = [0, 0, 1], sizes = [1, 8, 128], strides = [1, 1, 1]} : vector<1x8x133xf32> to vector<1x8x128xf32>
    %cst_21 = arith.constant -0.0576573759 : f32
    %95 = vector.broadcast %cst_21 : f32 to vector<1x8x128xf32>
    %96 = arith.mulf %95, %94 : vector<1x8x128xf32>
    %97 = arith.addf %93, %96 : vector<1x8x128xf32>
    %98 = vector.extract_strided_slice %86 {offsets = [0, 0, 1], sizes = [1, 8, 128], strides = [1, 1, 1]} : vector<1x8x133xf32> to vector<1x8x128xf32>
    %cst_22 = arith.constant -0.0255434643 : f32
    %99 = vector.broadcast %cst_22 : f32 to vector<1x8x128xf32>
    %100 = arith.mulf %99, %98 : vector<1x8x128xf32>
    %101 = arith.addf %97, %100 : vector<1x8x128xf32>
    %102 = vector.extract_strided_slice %79 {offsets = [0, 0, 2], sizes = [1, 8, 128], strides = [1, 1, 1]} : vector<1x8x133xf32> to vector<1x8x128xf32>
    %cst_23 = arith.constant 0.443209797 : f32
    %103 = vector.broadcast %cst_23 : f32 to vector<1x8x128xf32>
    %104 = arith.mulf %103, %102 : vector<1x8x128xf32>
    %105 = arith.addf %101, %104 : vector<1x8x128xf32>
    %106 = vector.extract_strided_slice %86 {offsets = [0, 0, 2], sizes = [1, 8, 128], strides = [1, 1, 1]} : vector<1x8x133xf32> to vector<1x8x128xf32>
    %cst_24 = arith.constant 0.128572613 : f32
    %107 = vector.broadcast %cst_24 : f32 to vector<1x8x128xf32>
    %108 = arith.mulf %107, %106 : vector<1x8x128xf32>
    %109 = arith.addf %105, %108 : vector<1x8x128xf32>
    %110 = vector.extract_strided_slice %79 {offsets = [0, 0, 3], sizes = [1, 8, 128], strides = [1, 1, 1]} : vector<1x8x133xf32> to vector<1x8x128xf32>
    %cst_25 = arith.constant 0.128572613 : f32
    %111 = vector.broadcast %cst_25 : f32 to vector<1x8x128xf32>
    %112 = arith.mulf %111, %110 : vector<1x8x128xf32>
    %113 = arith.addf %109, %112 : vector<1x8x128xf32>
    %114 = vector.extract_strided_slice %86 {offsets = [0, 0, 3], sizes = [1, 8, 128], strides = [1, 1, 1]} : vector<1x8x133xf32> to vector<1x8x128xf32>
    %cst_26 = arith.constant 0.443209797 : f32
    %115 = vector.broadcast %cst_26 : f32 to vector<1x8x128xf32>
    %116 = arith.mulf %115, %114 : vector<1x8x128xf32>
    %117 = arith.addf %113, %116 : vector<1x8x128xf32>
    %118 = vector.extract_strided_slice %79 {offsets = [0, 0, 4], sizes = [1, 8, 128], strides = [1, 1, 1]} : vector<1x8x133xf32> to vector<1x8x128xf32>
    %cst_27 = arith.constant -0.0255434643 : f32
    %119 = vector.broadcast %cst_27 : f32 to vector<1x8x128xf32>
    %120 = arith.mulf %119, %118 : vector<1x8x128xf32>
    %121 = arith.addf %117, %120 : vector<1x8x128xf32>
    %122 = vector.extract_strided_slice %86 {offsets = [0, 0, 4], sizes = [1, 8, 128], strides = [1, 1, 1]} : vector<1x8x133xf32> to vector<1x8x128xf32>
    %cst_28 = arith.constant -0.0576573759 : f32
    %123 = vector.broadcast %cst_28 : f32 to vector<1x8x128xf32>
    %124 = arith.mulf %123, %122 : vector<1x8x128xf32>
    %125 = arith.addf %121, %124 : vector<1x8x128xf32>
    %126 = vector.extract_strided_slice %79 {offsets = [0, 0, 5], sizes = [1, 8, 128], strides = [1, 1, 1]} : vector<1x8x133xf32> to vector<1x8x128xf32>
    %cst_29 = arith.constant 0.00202896656 : f32
    %127 = vector.broadcast %cst_29 : f32 to vector<1x8x128xf32>
    %128 = arith.mulf %127, %126 : vector<1x8x128xf32>
    %129 = arith.addf %125, %128 : vector<1x8x128xf32>
    %130 = vector.extract_strided_slice %86 {offsets = [0, 0, 5], sizes = [1, 8, 128], strides = [1, 1, 1]} : vector<1x8x133xf32> to vector<1x8x128xf32>
    %cst_30 = arith.constant 0.00938946381 : f32
    %131 = vector.broadcast %cst_30 : f32 to vector<1x8x128xf32>
    %132 = arith.mulf %131, %130 : vector<1x8x128xf32>
    %133 = arith.addf %129, %132 : vector<1x8x128xf32>
    %134 = vector.shape_cast %133 : vector<1x8x128xf32> to vector<8x128xf32>
    %cst_31 = arith.constant 0.000000e+00 : f32
    %135 = vector.broadcast %cst_31 : f32 to vector<8x1xf32>
    %136 = vector.extract_strided_slice %134 {offsets = [0, 0], sizes = [8, 127], strides = [1, 1]} : vector<8x128xf32> to vector<8x127xf32>
    %137 = tpu.concatenate %135, %136 in 1 : vector<8x1xf32>, vector<8x127xf32> -> vector<8x128xf32>
    %138 = vector.extract_strided_slice %134 {offsets = [0, 1], sizes = [8, 127], strides = [1, 1]} : vector<8x128xf32> to vector<8x127xf32>
    %139 = tpu.concatenate %138, %135 in 1 : vector<8x127xf32>, vector<8x1xf32> -> vector<8x128xf32>
    %140 = tpu.concatenate %137, %134, %139 in 0 : vector<8x128xf32>, vector<8x128xf32>, vector<8x128xf32> -> vector<24x128xf32>
    %c0_32 = arith.constant 0 : index
    %c0_33 = arith.constant 0 : index
    %c0_34 = arith.constant 0 : index
    %141 = vector.load %arg4[%c0_32, %c0_33, %c0_34] : memref<2x8x24xf32, #tpu.memory_space<vmem>>, vector<1x8x24xf32>
    %142 = vector.shape_cast %141 : vector<1x8x24xf32> to vector<8x24xf32>
    %c0_35 = arith.constant 0 : index
    %c0_36 = arith.constant 0 : index
    %c0_37 = arith.constant 0 : index
    %143 = vector.load %arg5[%c0_35, %c0_36, %c0_37] : memref<2x8x1xf32, #tpu.memory_space<vmem>>, vector<1x8x1xf32>
    %144 = vector.shape_cast %143 : vector<1x8x1xf32> to vector<8x1xf32>
    %cst_38 = arith.constant dense<0.000000e+00> : vector<8x128xf32>
    %145 = tpu.matmul %142, %140, %cst_38 {dimension_numbers = #tpu.dot_dimension_numbers<[1], [0], [0], [1], [0, 0, 1, 1], [], []>} : vector<8x24xf32>, vector<24x128xf32>, vector<8x128xf32> -> vector<8x128xf32>
    %146 = vector.broadcast %144 : vector<8x1xf32> to vector<8x128xf32>
    %147 = arith.addf %145, %146 : vector<8x128xf32>
    %148 = vector.shape_cast %147 : vector<8x128xf32> to vector<1x8x128xf32>
    %149 = arith.addf %0, %148 : vector<1x8x128xf32>
    %150 = vector.extract_strided_slice %149 {offsets = [0, 0, 0], sizes = [1, 8, 1], strides = [1, 1, 1]} : vector<1x8x128xf32> to vector<1x8x1xf32>
    %151 = vector.shape_cast %150 : vector<1x8x1xf32> to vector<1x8x1xf32>
    %152 = vector.broadcast %151 : vector<1x8x1xf32> to vector<1x8x5xf32>
    %153 = vector.extract_strided_slice %149 {offsets = [0, 0, 127], sizes = [1, 8, 1], strides = [1, 1, 1]} : vector<1x8x128xf32> to vector<1x8x1xf32>
    %154 = vector.shape_cast %153 : vector<1x8x1xf32> to vector<1x8x1xf32>
    %155 = vector.broadcast %154 : vector<1x8x1xf32> to vector<1x8x5xf32>
    %156 = tpu.concatenate %152, %149, %155 in 2 : vector<1x8x5xf32>, vector<1x8x128xf32>, vector<1x8x5xf32> -> vector<1x8x138xf32>
    %157 = vector.extract_strided_slice %156 {offsets = [0, 0, 2], sizes = [1, 8, 128], strides = [1, 1, 1]} : vector<1x8x138xf32> to vector<1x8x128xf32>
    %158 = vector.extract_strided_slice %156 {offsets = [0, 0, 3], sizes = [1, 8, 128], strides = [1, 1, 1]} : vector<1x8x138xf32> to vector<1x8x128xf32>
    %159 = vector.extract_strided_slice %156 {offsets = [0, 0, 4], sizes = [1, 8, 128], strides = [1, 1, 1]} : vector<1x8x138xf32> to vector<1x8x128xf32>
    %160 = vector.extract_strided_slice %156 {offsets = [0, 0, 5], sizes = [1, 8, 128], strides = [1, 1, 1]} : vector<1x8x138xf32> to vector<1x8x128xf32>
    %161 = vector.extract_strided_slice %156 {offsets = [0, 0, 6], sizes = [1, 8, 128], strides = [1, 1, 1]} : vector<1x8x138xf32> to vector<1x8x128xf32>
    %162 = vector.extract_strided_slice %156 {offsets = [0, 0, 7], sizes = [1, 8, 128], strides = [1, 1, 1]} : vector<1x8x138xf32> to vector<1x8x128xf32>
    %163 = vector.extract_strided_slice %156 {offsets = [0, 0, 8], sizes = [1, 8, 128], strides = [1, 1, 1]} : vector<1x8x138xf32> to vector<1x8x128xf32>
    %cst_39 = arith.constant 0.0187789276 : f32
    %164 = vector.broadcast %cst_39 : f32 to vector<1x8x128xf32>
    %165 = arith.mulf %164, %162 : vector<1x8x128xf32>
    %cst_40 = arith.constant 0.00405793311 : f32
    %166 = vector.broadcast %cst_40 : f32 to vector<1x8x128xf32>
    %167 = arith.mulf %166, %163 : vector<1x8x128xf32>
    %cst_41 = arith.constant -0.115314752 : f32
    %168 = vector.broadcast %cst_41 : f32 to vector<1x8x128xf32>
    %169 = arith.mulf %168, %161 : vector<1x8x128xf32>
    %170 = arith.addf %165, %169 : vector<1x8x128xf32>
    %cst_42 = arith.constant -0.0510869287 : f32
    %171 = vector.broadcast %cst_42 : f32 to vector<1x8x128xf32>
    %172 = arith.mulf %171, %162 : vector<1x8x128xf32>
    %173 = arith.addf %167, %172 : vector<1x8x128xf32>
    %cst_43 = arith.constant 0.886419594 : f32
    %174 = vector.broadcast %cst_43 : f32 to vector<1x8x128xf32>
    %175 = arith.mulf %174, %160 : vector<1x8x128xf32>
    %176 = arith.addf %170, %175 : vector<1x8x128xf32>
    %cst_44 = arith.constant 0.257145226 : f32
    %177 = vector.broadcast %cst_44 : f32 to vector<1x8x128xf32>
    %178 = arith.mulf %177, %161 : vector<1x8x128xf32>
    %179 = arith.addf %173, %178 : vector<1x8x128xf32>
    %cst_45 = arith.constant 0.257145226 : f32
    %180 = vector.broadcast %cst_45 : f32 to vector<1x8x128xf32>
    %181 = arith.mulf %180, %159 : vector<1x8x128xf32>
    %182 = arith.addf %176, %181 : vector<1x8x128xf32>
    %cst_46 = arith.constant 0.886419594 : f32
    %183 = vector.broadcast %cst_46 : f32 to vector<1x8x128xf32>
    %184 = arith.mulf %183, %160 : vector<1x8x128xf32>
    %185 = arith.addf %179, %184 : vector<1x8x128xf32>
    %cst_47 = arith.constant -0.0510869287 : f32
    %186 = vector.broadcast %cst_47 : f32 to vector<1x8x128xf32>
    %187 = arith.mulf %186, %158 : vector<1x8x128xf32>
    %188 = arith.addf %182, %187 : vector<1x8x128xf32>
    %cst_48 = arith.constant -0.115314752 : f32
    %189 = vector.broadcast %cst_48 : f32 to vector<1x8x128xf32>
    %190 = arith.mulf %189, %159 : vector<1x8x128xf32>
    %191 = arith.addf %185, %190 : vector<1x8x128xf32>
    %cst_49 = arith.constant 0.00405793311 : f32
    %192 = vector.broadcast %cst_49 : f32 to vector<1x8x128xf32>
    %193 = arith.mulf %192, %157 : vector<1x8x128xf32>
    %194 = arith.addf %188, %193 : vector<1x8x128xf32>
    %cst_50 = arith.constant 0.0187789276 : f32
    %195 = vector.broadcast %cst_50 : f32 to vector<1x8x128xf32>
    %196 = arith.mulf %195, %158 : vector<1x8x128xf32>
    %197 = arith.addf %191, %196 : vector<1x8x128xf32>
    %198 = vector.broadcast %3 : vector<1x8x1xf32> to vector<1x8x128xf32>
    %199 = arith.mulf %194, %198 : vector<1x8x128xf32>
    %200 = math.sin %199 : vector<1x8x128xf32>
    %201 = vector.broadcast %3 : vector<1x8x1xf32> to vector<1x8x128xf32>
    %202 = arith.mulf %197, %201 : vector<1x8x128xf32>
    %203 = math.sin %202 : vector<1x8x128xf32>
    %204 = vector.broadcast %10 : vector<1x8x1xf32> to vector<1x8x128xf32>
    %205 = arith.mulf %204, %200 : vector<1x8x128xf32>
    %206 = arith.mulf %205, %200 : vector<1x8x128xf32>
    %207 = arith.addf %194, %206 : vector<1x8x128xf32>
    %208 = vector.broadcast %10 : vector<1x8x1xf32> to vector<1x8x128xf32>
    %209 = arith.mulf %208, %203 : vector<1x8x128xf32>
    %210 = arith.mulf %209, %203 : vector<1x8x128xf32>
    %211 = arith.addf %197, %210 : vector<1x8x128xf32>
    %212 = vector.extract_strided_slice %207 {offsets = [0, 0, 0], sizes = [1, 8, 1], strides = [1, 1, 1]} : vector<1x8x128xf32> to vector<1x8x1xf32>
    %213 = vector.shape_cast %212 : vector<1x8x1xf32> to vector<1x8x1xf32>
    %214 = vector.broadcast %213 : vector<1x8x1xf32> to vector<1x8x2xf32>
    %215 = vector.extract_strided_slice %211 {offsets = [0, 0, 127], sizes = [1, 8, 1], strides = [1, 1, 1]} : vector<1x8x128xf32> to vector<1x8x1xf32>
    %216 = vector.shape_cast %215 : vector<1x8x1xf32> to vector<1x8x1xf32>
    %217 = vector.broadcast %216 : vector<1x8x1xf32> to vector<1x8x3xf32>
    %218 = tpu.concatenate %214, %207, %217 in 2 : vector<1x8x2xf32>, vector<1x8x128xf32>, vector<1x8x3xf32> -> vector<1x8x133xf32>
    %219 = vector.extract_strided_slice %207 {offsets = [0, 0, 0], sizes = [1, 8, 1], strides = [1, 1, 1]} : vector<1x8x128xf32> to vector<1x8x1xf32>
    %220 = vector.shape_cast %219 : vector<1x8x1xf32> to vector<1x8x1xf32>
    %221 = vector.broadcast %220 : vector<1x8x1xf32> to vector<1x8x3xf32>
    %222 = vector.extract_strided_slice %211 {offsets = [0, 0, 127], sizes = [1, 8, 1], strides = [1, 1, 1]} : vector<1x8x128xf32> to vector<1x8x1xf32>
    %223 = vector.shape_cast %222 : vector<1x8x1xf32> to vector<1x8x1xf32>
    %224 = vector.broadcast %223 : vector<1x8x1xf32> to vector<1x8x2xf32>
    %225 = tpu.concatenate %221, %211, %224 in 2 : vector<1x8x3xf32>, vector<1x8x128xf32>, vector<1x8x2xf32> -> vector<1x8x133xf32>
    %226 = vector.extract_strided_slice %218 {offsets = [0, 0, 0], sizes = [1, 8, 128], strides = [1, 1, 1]} : vector<1x8x133xf32> to vector<1x8x128xf32>
    %cst_51 = arith.constant 0.00938946381 : f32
    %227 = vector.broadcast %cst_51 : f32 to vector<1x8x128xf32>
    %228 = arith.mulf %227, %226 : vector<1x8x128xf32>
    %229 = vector.extract_strided_slice %225 {offsets = [0, 0, 0], sizes = [1, 8, 128], strides = [1, 1, 1]} : vector<1x8x133xf32> to vector<1x8x128xf32>
    %cst_52 = arith.constant 0.00202896656 : f32
    %230 = vector.broadcast %cst_52 : f32 to vector<1x8x128xf32>
    %231 = arith.mulf %230, %229 : vector<1x8x128xf32>
    %232 = arith.addf %228, %231 : vector<1x8x128xf32>
    %233 = vector.extract_strided_slice %218 {offsets = [0, 0, 1], sizes = [1, 8, 128], strides = [1, 1, 1]} : vector<1x8x133xf32> to vector<1x8x128xf32>
    %cst_53 = arith.constant -0.0576573759 : f32
    %234 = vector.broadcast %cst_53 : f32 to vector<1x8x128xf32>
    %235 = arith.mulf %234, %233 : vector<1x8x128xf32>
    %236 = arith.addf %232, %235 : vector<1x8x128xf32>
    %237 = vector.extract_strided_slice %225 {offsets = [0, 0, 1], sizes = [1, 8, 128], strides = [1, 1, 1]} : vector<1x8x133xf32> to vector<1x8x128xf32>
    %cst_54 = arith.constant -0.0255434643 : f32
    %238 = vector.broadcast %cst_54 : f32 to vector<1x8x128xf32>
    %239 = arith.mulf %238, %237 : vector<1x8x128xf32>
    %240 = arith.addf %236, %239 : vector<1x8x128xf32>
    %241 = vector.extract_strided_slice %218 {offsets = [0, 0, 2], sizes = [1, 8, 128], strides = [1, 1, 1]} : vector<1x8x133xf32> to vector<1x8x128xf32>
    %cst_55 = arith.constant 0.443209797 : f32
    %242 = vector.broadcast %cst_55 : f32 to vector<1x8x128xf32>
    %243 = arith.mulf %242, %241 : vector<1x8x128xf32>
    %244 = arith.addf %240, %243 : vector<1x8x128xf32>
    %245 = vector.extract_strided_slice %225 {offsets = [0, 0, 2], sizes = [1, 8, 128], strides = [1, 1, 1]} : vector<1x8x133xf32> to vector<1x8x128xf32>
    %cst_56 = arith.constant 0.128572613 : f32
    %246 = vector.broadcast %cst_56 : f32 to vector<1x8x128xf32>
    %247 = arith.mulf %246, %245 : vector<1x8x128xf32>
    %248 = arith.addf %244, %247 : vector<1x8x128xf32>
    %249 = vector.extract_strided_slice %218 {offsets = [0, 0, 3], sizes = [1, 8, 128], strides = [1, 1, 1]} : vector<1x8x133xf32> to vector<1x8x128xf32>
    %cst_57 = arith.constant 0.128572613 : f32
    %250 = vector.broadcast %cst_57 : f32 to vector<1x8x128xf32>
    %251 = arith.mulf %250, %249 : vector<1x8x128xf32>
    %252 = arith.addf %248, %251 : vector<1x8x128xf32>
    %253 = vector.extract_strided_slice %225 {offsets = [0, 0, 3], sizes = [1, 8, 128], strides = [1, 1, 1]} : vector<1x8x133xf32> to vector<1x8x128xf32>
    %cst_58 = arith.constant 0.443209797 : f32
    %254 = vector.broadcast %cst_58 : f32 to vector<1x8x128xf32>
    %255 = arith.mulf %254, %253 : vector<1x8x128xf32>
    %256 = arith.addf %252, %255 : vector<1x8x128xf32>
    %257 = vector.extract_strided_slice %218 {offsets = [0, 0, 4], sizes = [1, 8, 128], strides = [1, 1, 1]} : vector<1x8x133xf32> to vector<1x8x128xf32>
    %cst_59 = arith.constant -0.0255434643 : f32
    %258 = vector.broadcast %cst_59 : f32 to vector<1x8x128xf32>
    %259 = arith.mulf %258, %257 : vector<1x8x128xf32>
    %260 = arith.addf %256, %259 : vector<1x8x128xf32>
    %261 = vector.extract_strided_slice %225 {offsets = [0, 0, 4], sizes = [1, 8, 128], strides = [1, 1, 1]} : vector<1x8x133xf32> to vector<1x8x128xf32>
    %cst_60 = arith.constant -0.0576573759 : f32
    %262 = vector.broadcast %cst_60 : f32 to vector<1x8x128xf32>
    %263 = arith.mulf %262, %261 : vector<1x8x128xf32>
    %264 = arith.addf %260, %263 : vector<1x8x128xf32>
    %265 = vector.extract_strided_slice %218 {offsets = [0, 0, 5], sizes = [1, 8, 128], strides = [1, 1, 1]} : vector<1x8x133xf32> to vector<1x8x128xf32>
    %cst_61 = arith.constant 0.00202896656 : f32
    %266 = vector.broadcast %cst_61 : f32 to vector<1x8x128xf32>
    %267 = arith.mulf %266, %265 : vector<1x8x128xf32>
    %268 = arith.addf %264, %267 : vector<1x8x128xf32>
    %269 = vector.extract_strided_slice %225 {offsets = [0, 0, 5], sizes = [1, 8, 128], strides = [1, 1, 1]} : vector<1x8x133xf32> to vector<1x8x128xf32>
    %cst_62 = arith.constant 0.00938946381 : f32
    %270 = vector.broadcast %cst_62 : f32 to vector<1x8x128xf32>
    %271 = arith.mulf %270, %269 : vector<1x8x128xf32>
    %272 = arith.addf %268, %271 : vector<1x8x128xf32>
    %273 = vector.shape_cast %272 : vector<1x8x128xf32> to vector<8x128xf32>
    %cst_63 = arith.constant 0.000000e+00 : f32
    %274 = vector.broadcast %cst_63 : f32 to vector<8x3xf32>
    %275 = vector.extract_strided_slice %273 {offsets = [0, 0], sizes = [8, 125], strides = [1, 1]} : vector<8x128xf32> to vector<8x125xf32>
    %276 = tpu.concatenate %274, %275 in 1 : vector<8x3xf32>, vector<8x125xf32> -> vector<8x128xf32>
    %277 = vector.extract_strided_slice %273 {offsets = [0, 3], sizes = [8, 125], strides = [1, 1]} : vector<8x128xf32> to vector<8x125xf32>
    %278 = tpu.concatenate %277, %274 in 1 : vector<8x125xf32>, vector<8x3xf32> -> vector<8x128xf32>
    %279 = tpu.concatenate %276, %273, %278 in 0 : vector<8x128xf32>, vector<8x128xf32>, vector<8x128xf32> -> vector<24x128xf32>
    %c1 = arith.constant 1 : index
    %c0_64 = arith.constant 0 : index
    %c0_65 = arith.constant 0 : index
    %280 = vector.load %arg4[%c1, %c0_64, %c0_65] : memref<2x8x24xf32, #tpu.memory_space<vmem>>, vector<1x8x24xf32>
    %281 = vector.shape_cast %280 : vector<1x8x24xf32> to vector<8x24xf32>
    %c1_66 = arith.constant 1 : index
    %c0_67 = arith.constant 0 : index
    %c0_68 = arith.constant 0 : index
    %282 = vector.load %arg5[%c1_66, %c0_67, %c0_68] : memref<2x8x1xf32, #tpu.memory_space<vmem>>, vector<1x8x1xf32>
    %283 = vector.shape_cast %282 : vector<1x8x1xf32> to vector<8x1xf32>
    %cst_69 = arith.constant dense<0.000000e+00> : vector<8x128xf32>
    %284 = tpu.matmul %281, %279, %cst_69 {dimension_numbers = #tpu.dot_dimension_numbers<[1], [0], [0], [1], [0, 0, 1, 1], [], []>} : vector<8x24xf32>, vector<24x128xf32>, vector<8x128xf32> -> vector<8x128xf32>
    %285 = vector.broadcast %283 : vector<8x1xf32> to vector<8x128xf32>
    %286 = arith.addf %284, %285 : vector<8x128xf32>
    %287 = vector.shape_cast %286 : vector<8x128xf32> to vector<1x8x128xf32>
    %288 = arith.addf %149, %287 : vector<1x8x128xf32>
    %c0_70 = arith.constant 0 : index
    %c0_71 = arith.constant 0 : index
    %c0_72 = arith.constant 0 : index
    %289 = vector.load %arg6[%c0_70, %c0_71, %c0_72] : memref<1x8x128xf32, #tpu.memory_space<vmem>>, vector<1x8x128xf32>
    tpu.vector_store %arg6[%c0_70, %c0_71, %c0_72], %288 {strides = array<i32>} : memref<1x8x128xf32, #tpu.memory_space<vmem>>, vector<1x8x128xf32>,
    return
  }
  func.func @transform_0(%arg0: i32) -> (i32, i32, i32) {
    %c0_i32 = arith.constant 0 : i32
    %c0_i32_0 = arith.constant 0 : i32
    %c0_i32_1 = arith.constant 0 : i32
    return %arg0, %c0_i32, %c0_i32_0 : i32, i32, i32
  }
  func.func @transform_1(%arg0: i32) -> (i32, i32) {
    %c0_i32 = arith.constant 0 : i32
    %c0_i32_0 = arith.constant 0 : i32
    %c0_i32_1 = arith.constant 0 : i32
    return %c0_i32, %c0_i32_0 : i32, i32
  }
  func.func @transform_2(%arg0: i32) -> (i32, i32) {
    %c0_i32 = arith.constant 0 : i32
    %c0_i32_0 = arith.constant 0 : i32
    %c0_i32_1 = arith.constant 0 : i32
    return %c0_i32, %c0_i32_0 : i32, i32
  }
  func.func @transform_3(%arg0: i32) -> (i32, i32, i32) {
    %c0_i32 = arith.constant 0 : i32
    %c0_i32_0 = arith.constant 0 : i32
    %c0_i32_1 = arith.constant 0 : i32
    %c0_i32_2 = arith.constant 0 : i32
    return %c0_i32, %c0_i32_0, %c0_i32_1 : i32, i32, i32
  }
  func.func @transform_4(%arg0: i32) -> (i32, i32, i32) {
    %c0_i32 = arith.constant 0 : i32
    %c0_i32_0 = arith.constant 0 : i32
    %c0_i32_1 = arith.constant 0 : i32
    %c0_i32_2 = arith.constant 0 : i32
    return %c0_i32, %c0_i32_0, %c0_i32_1 : i32, i32, i32
  }
  func.func @transform_5(%arg0: i32) -> (i32, i32, i32) {
    %c0_i32 = arith.constant 0 : i32
    %c0_i32_0 = arith.constant 0 : i32
    %c0_i32_1 = arith.constant 0 : i32
    return %arg0, %c0_i32, %c0_i32_0 : i32, i32, i32
  }
}

</mosaic_0001>

<llo_original>
// kernel: tpu_custom_call.1
$region0: #{tpu_custom_call.1}
  #allocation0 [shape = 'u32[]', space=smem, size = 0x4, offset = 0x4, fixed_abs, tag = 'smem constant byte address 0x4 - core index']
  #allocation1 [shape = 'u32[72,128]{1,0:T(1,128)}', space=vmem, size = 0x9000, scoped, tag = 'internal scratch']
  %s0 = inlined_call_operand.vmem [shape: f32[2,8,128], index: 0, kind: input, shape index: {}]
  %s1 = inlined_call_operand.vmem [shape: f32[8,1], index: 1, kind: input, shape index: {}]
  %s2 = inlined_call_operand.vmem [shape: f32[8,1], index: 2, kind: input, shape index: {}]
  %s3 = inlined_call_operand.vmem [shape: f32[2,8,24], index: 3, kind: input, shape index: {}]
  %s4 = inlined_call_operand.vmem [shape: f32[2,8,1], index: 4, kind: input, shape index: {}]
  %s5 = inlined_call_operand.hbm [shape: f32[2,8,128], index: 5, kind: output, shape index: {}]
  %s6 = sld [smem:[#allocation0]]
  $region53: #{tpu_custom_call.1} parent=0
    _
  %s8 = ssub.s32 1, %s6
  %s9 = scalar_select 0, %s8, %s6
  $region1: #{tpu_custom_call.1} parent=0
    #allocation2 [shape = 'u8[8192]{0}', space=vmem, size = 0x2000, scoped, tag = 'output window, operand 0']
    #allocation3 [shape = 's32[2]{0}', space=sflag, size = 0x8, scoped, tag = 'scoped memory for tpu_custom_call.1']
    %10 = vsyncpa [#allocation3], 0
    %s11 = scalar_lea.sflag [#allocation3], 1
    %12 = vsyncpa %s11, 0
    loop: start=0, step=1, limit=4
    $region2: #{tpu_custom_call.1} parent=1 // loop_pre_header
      _
    $region3: #{tpu_custom_call.1} parent=1 // loop_header
      %s14 = sphi 0, %s18
      %p15 = scmp.ge.s32.totalorder %s14, 4
      %s24 = sphi 0, %s26
      %s27 = sphi 0, %s24
      %s28 = sphi 0, %s27
      %s44 = sphi 0, %s28
      %s48 = sphi 0, %s48
      %s50 = sphi 0, %s48
      %s51 = sphi 0, %s50
      %s65 = sphi 0, %s51
      %s69 = sphi 0, %s69
      %s71 = sphi 0, %s69
      %s72 = sphi 0, %s71
      %s86 = sphi 0, %s72
      %s90 = sphi 0, %s90
      %s92 = sphi 0, %s90
      %s93 = sphi 0, %s92
      %s107 = sphi 0, %s93
      %s111 = sphi 0, %s111
      %s113 = sphi 0, %s111
      %s114 = sphi 0, %s113
      %s128 = sphi 0, %s114
      %s134 = sphi 0, %s136
      %s137 = sphi 0, %s134
      %s138 = sphi 0, %s137
      %s154 = sphi 0, %s138
    $region4: #{tpu_custom_call.1} parent=1 // loop_header_branch
      %17 = sbr.rel (%p15) target = $region8
    $region5: #{tpu_custom_call.1} parent=1 // loop_body
      %s19 = ssub.s32 %s14, 1
      %s20 = ssub.s32 %s14, 2
      %s21 = sadd.s32 %s14, 1
      %s22 = ssub.s32 %s14, %s21
      %p23 = scmp.eq.s32.totalorder %s22, 0
      %s25 = sadd.s32 %s24, 1
      %s26 = scalar_select %p23, %s24, %s25
      %p29 = pneg %p23
      %p30 = scmp.eq.s32.totalorder %s14, 1
      %p31 = por %p29, %p30
      %p32 = scmp.ne.s32.totalorder %s24, %s27
      %p33 = scmp.eq.s32.totalorder %s14, 0
      %p34 = por %p32, %p33
      %p35 = scmp.ne.s32.totalorder %s24, %s27
      %p36 = scmp.eq.s32.totalorder %s19, 1
      %p37 = por %p35, %p36
      %p38 = scmp.ne.s32.totalorder %s27, %s28
      %p39 = scmp.eq.s32.totalorder %s19, 0
      %p40 = por %p38, %p39
      %p41 = scmp.ne.s32.totalorder %s27, %s28
      %p42 = scmp.eq.s32.totalorder %s20, 1
      %p43 = por %p41, %p42
      %p45 = scmp.ne.s32.totalorder %s28, %s44
      %p46 = scmp.eq.s32.totalorder %s20, 0
      %p47 = por %p45, %p46
      %s49 = sadd.s32 %s48, 1
      %p52 = scmp.eq.s32.totalorder %s14, 1
      %p53 = scmp.ne.s32.totalorder %s48, %s50
      %p54 = scmp.eq.s32.totalorder %s14, 0
      %p55 = por %p53, %p54
      %p56 = scmp.ne.s32.totalorder %s48, %s50
      %p57 = scmp.eq.s32.totalorder %s19, 1
      %p58 = por %p56, %p57
      %p59 = scmp.ne.s32.totalorder %s50, %s51
      %p60 = scmp.eq.s32.totalorder %s19, 0
      %p61 = por %p59, %p60
      %p62 = scmp.ne.s32.totalorder %s50, %s51
      %p63 = scmp.eq.s32.totalorder %s20, 1
      %p64 = por %p62, %p63
      %p66 = scmp.ne.s32.totalorder %s51, %s65
      %p67 = scmp.eq.s32.totalorder %s20, 0
      %p68 = por %p66, %p67
      %s70 = sadd.s32 %s69, 1
      %p73 = scmp.eq.s32.totalorder %s14, 1
      %p74 = scmp.ne.s32.totalorder %s69, %s71
      %p75 = scmp.eq.s32.totalorder %s14, 0
      %p76 = por %p74, %p75
      %p77 = scmp.ne.s32.totalorder %s69, %s71
      %p78 = scmp.eq.s32.totalorder %s19, 1
      %p79 = por %p77, %p78
      %p80 = scmp.ne.s32.totalorder %s71, %s72
      %p81 = scmp.eq.s32.totalorder %s19, 0
      %p82 = por %p80, %p81
      %p83 = scmp.ne.s32.totalorder %s71, %s72
      %p84 = scmp.eq.s32.totalorder %s20, 1
      %p85 = por %p83, %p84
      %p87 = scmp.ne.s32.totalorder %s72, %s86
      %p88 = scmp.eq.s32.totalorder %s20, 0
      %p89 = por %p87, %p88
      %s91 = sadd.s32 %s90, 1
      %p94 = scmp.eq.s32.totalorder %s14, 1
      %p95 = scmp.ne.s32.totalorder %s90, %s92
      %p96 = scmp.eq.s32.totalorder %s14, 0
      %p97 = por %p95, %p96
      %p98 = scmp.ne.s32.totalorder %s90, %s92
      %p99 = scmp.eq.s32.totalorder %s19, 1
      %p100 = por %p98, %p99
      %p101 = scmp.ne.s32.totalorder %s92, %s93
      %p102 = scmp.eq.s32.totalorder %s19, 0
      %p103 = por %p101, %p102
      %p104 = scmp.ne.s32.totalorder %s92, %s93
      %p105 = scmp.eq.s32.totalorder %s20, 1
      %p106 = por %p104, %p105
      %p108 = scmp.ne.s32.totalorder %s93, %s107
      %p109 = scmp.eq.s32.totalorder %s20, 0
      %p110 = por %p108, %p109
      %s112 = sadd.s32 %s111, 1
      %p115 = scmp.eq.s32.totalorder %s14, 1
      %p116 = scmp.ne.s32.totalorder %s111, %s113
      %p117 = scmp.eq.s32.totalorder %s14, 0
      %p118 = por %p116, %p117
      %p119 = scmp.ne.s32.totalorder %s111, %s113
      %p120 = scmp.eq.s32.totalorder %s19, 1
      %p121 = por %p119, %p120
      %p122 = scmp.ne.s32.totalorder %s113, %s114
      %p123 = scmp.eq.s32.totalorder %s19, 0
      %p124 = por %p122, %p123
      %p125 = scmp.ne.s32.totalorder %s113, %s114
      %p126 = scmp.eq.s32.totalorder %s20, 1
      %p127 = por %p125, %p126
      %p129 = scmp.ne.s32.totalorder %s114, %s128
      %p130 = scmp.eq.s32.totalorder %s20, 0
      %p131 = por %p129, %p130
      %s132 = ssub.s32 %s14, %s21
      %p133 = scmp.eq.s32.totalorder %s132, 0
      %s135 = sadd.s32 %s134, 1
      %s136 = scalar_select %p133, %s134, %s135
      %p139 = pneg %p133
      %p140 = scmp.eq.s32.totalorder %s14, 1
      %p141 = por %p139, %p140
      %p142 = scmp.ne.s32.totalorder %s134, %s137
      %p143 = scmp.eq.s32.totalorder %s14, 0
      %p144 = por %p142, %p143
      %p145 = scmp.ne.s32.totalorder %s134, %s137
      %p146 = scmp.eq.s32.totalorder %s19, 1
      %p147 = por %p145, %p146
      %p148 = scmp.ne.s32.totalorder %s137, %s138
      %p149 = scmp.eq.s32.totalorder %s19, 0
      %p150 = por %p148, %p149
      %p151 = scmp.ne.s32.totalorder %s137, %s138
      %p152 = scmp.eq.s32.totalorder %s20, 1
      %p153 = por %p151, %p152
      %p155 = scmp.ne.s32.totalorder %s138, %s154
      %p156 = scmp.eq.s32.totalorder %s20, 0
      %p157 = por %p155, %p156
      %p158 = scmp.le.s32.totalorder 1, %s14
      %p159 = scmp.lt.s32.totalorder %s14, 3
      %p160 = pnand %p158, %p159
      %p161 = pneg %p160
      // Predicated region
      $region9: #{tpu_custom_call.1} parent=5 // pred_check
        _
      $region10: #{tpu_custom_call.1} parent=5 // pred_check_branch
        %163 = sbr.rel (%p160) target = $region12
      $region11: #{tpu_custom_call.1} parent=5 // pred_region
        %s164 = ssub.s32 %s14, 1
        // Predicated region
        $region13: #{tpu_custom_call.1} parent=11 // pred_check
          %p165 = pneg %p61
        $region14: #{tpu_custom_call.1} parent=11 // pred_check_branch
          %167 = sbr.rel (%p165) target = $region16
        $region15: #{tpu_custom_call.1} parent=11 // pred_region
          _
        $region16: #{tpu_custom_call.1} parent=11 // pred_fallthru
          _
        // Predicated region
        $region17: #{tpu_custom_call.1} parent=11 // pred_check
          %p168 = pneg %p82
        $region18: #{tpu_custom_call.1} parent=11 // pred_check_branch
          %170 = sbr.rel (%p168) target = $region20
        $region19: #{tpu_custom_call.1} parent=11 // pred_region
          _
        $region20: #{tpu_custom_call.1} parent=11 // pred_fallthru
          _
        // Predicated region
        $region21: #{tpu_custom_call.1} parent=11 // pred_check
          %p171 = pneg %p103
        $region22: #{tpu_custom_call.1} parent=11 // pred_check_branch
          %173 = sbr.rel (%p171) target = $region24
        $region23: #{tpu_custom_call.1} parent=11 // pred_region
          _
        $region24: #{tpu_custom_call.1} parent=11 // pred_fallthru
          _
        // Predicated region
        $region25: #{tpu_custom_call.1} parent=11 // pred_check
          %p174 = pneg %p124
        $region26: #{tpu_custom_call.1} parent=11 // pred_check_branch
          %176 = sbr.rel (%p174) target = $region28
        $region27: #{tpu_custom_call.1} parent=11 // pred_region
          _
        $region28: #{tpu_custom_call.1} parent=11 // pred_fallthru
          _
      $region12: #{tpu_custom_call.1} parent=5 // pred_fallthru
        _
      %p177 = scmp.lt.s32.totalorder %s14, 2
      // Predicated region
      $region29: #{tpu_custom_call.1} parent=5 // pred_check
        %p178 = pneg %p177
      $region30: #{tpu_custom_call.1} parent=5 // pred_check_branch
        %180 = sbr.rel (%p178) target = $region32
      $region31: #{tpu_custom_call.1} parent=5 // pred_region
        // Predicated region
        $region33: #{tpu_custom_call.1} parent=31 // pred_check
          %p181 = pneg %p34
        $region34: #{tpu_custom_call.1} parent=31 // pred_check_branch
          %183 = sbr.rel (%p181) target = $region36
        $region35: #{tpu_custom_call.1} parent=31 // pred_region
          %p184 = scmp.lt.s32.totalorder %s14, 1
          %s185 = scalar_select %p184, %s14, 1
          %s186 = smul.addr %s185, 8
          %s187 = scalar_lea.vmem %s0, %s186
        $region36: #{tpu_custom_call.1} parent=31 // pred_fallthru
          _
      $region32: #{tpu_custom_call.1} parent=5 // pred_fallthru
        _
      %p188 = scmp.le.s32.totalorder 1, %s14
      %p189 = scmp.lt.s32.totalorder %s14, 3
      %p190 = pnand %p188, %p189
      %p191 = pneg %p190
      // Predicated region
      $region37: #{tpu_custom_call.1} parent=5 // pred_check
        _
      $region38: #{tpu_custom_call.1} parent=5 // pred_check_branch
        %193 = sbr.rel (%p190) target = $region40
      $region39: #{tpu_custom_call.1} parent=5 // pred_region
        %s194 = ssub.s32 %s14, 1
        %p195 = scmp.lt.s32.totalorder %s19, 1
        %s196 = scalar_select %p195, %s19, 1
        %s197 = smul.addr %s196, 8
        %s198 = scalar_lea.vmem %s0, %s197
        %p199 = pneg %p40
        %p200 = pneg %p37
        %p201 = pneg %p61
        %p202 = pneg %p58
        %p203 = pneg %p82
        %p204 = pneg %p79
        %p205 = pneg %p103
        %p206 = pneg %p100
        %p207 = pneg %p124
        %p208 = pneg %p121
        %p209 = pneg %p150
        %p210 = pneg %p147
        %s211 = sand.u32 %s137, 1
        %s212 = scalar_lea.sflag [#allocation3], %s211
        %s213 = sand.u32 %s137, 1
        %s214 = smul.addr %s213, 8
        %s215 = scalar_lea.vmem [#allocation2], %s214
        %p216 = scmp.lt.s32.totalorder %s19, 1
        %s217 = scalar_select %p216, %s19, 1
        %s218 = smul.addr %s217, 8
        %s219 = scalar_lea.vmem %s0, %s218
        %v220 = vld [vmem:[%s219] sm:$0xff]
        %v221 = vld [vmem:[%s1] sm:$0xff]
        %v222 = vmul.f32 %v221, 1.442695
        %v223 = vpow.pop %v222
        %v224 = vld [vmem:[%s2] sm:$0xff]
        %v225 = vmul.f32 %v224, 1.442695
        %v226 = vpow.pop %v225
        %v227 = vadd.f32 %v226, 1e-09
        %v228 = vrcp.pop %v227
        %v229 = vmul.f32 %v227, %v228
        %v230 = vsub.f32 1.0, %v229
        %v231 = vmul.f32 %v228, %v230
        %v232 = vadd.f32 %v228, %v231
        %vm233 = vweird.f32 %v227
        %vm234 = vweird.f32 %v228
        %vm235 = vmor %vm233, %vm234
        %v236 = vsel %vm235, %v228, %v232
        %v237 = vand.u32 2147483647, %v227
        %vm238 = vcmp.eq.f32.partialorder %v237, 8.507059e+37
        %v239 = vand.u32 %v227, 2147483648
        %v240 = vor.u32 1.1754944e-38, %v239
        %v241 = vsel %vm238, %v240, %v236
        %v242 = vmul.f32 1.0, %v241
        %244 = vset.pattern.permute.xlu0 0
        %245 = vperm.xlu0 %244, %v220
        %v246 = vpop.permute.xlu0 %245
        %248 = vset.pattern.permute.xlu0 127
        %249 = vperm.xlu0 %248, %v220
        %v250 = vpop.permute.xlu0 %249
        %252 = vrot.lane.b32.xlu0 %v220, 5
        %v253 = vpop.permute.xlu0 %252
        %vm255 = vcmask 39936
        %v256 = vsel %vm255, %v246, %v253
        %v257 = vsel %vm255, %v253, %v250
        %v258 = vmul.f32 %v256, 0.018778928
        %v259 = vmul.f32 %v257, 0.018778928
        %v260 = vmul.f32 %v256, 0.004057933
        %v261 = vmul.f32 %v257, 0.004057933
        %v262 = vmul.f32 %v256, -0.11531475
        %v263 = vmul.f32 %v257, -0.11531475
        %266 = vrot.lane.b32.xlu0 %v262, 1
        %v267 = vpop.permute.xlu0 %266
        %268 = vrot.lane.b32.xlu0 %v263, 1
        %v269 = vpop.permute.xlu0 %268
        %vm270 = vcmask 7168
        %v271 = vsel %vm270, %v267, %v269
        %v274 = vadd.f32 %v258, %v267
        %v275 = vadd.f32 %v259, %v271
        %v276 = vmul.f32 %v256, -0.05108693
        %v277 = vmul.f32 %v257, -0.05108693
        %280 = vrot.lane.b32.xlu0 %v276, 1
        %v281 = vpop.permute.xlu0 %280
        %282 = vrot.lane.b32.xlu0 %v277, 1
        %v283 = vpop.permute.xlu0 %282
        %v284 = vsel %vm270, %v281, %v283
        %v287 = vadd.f32 %v260, %v281
        %v288 = vadd.f32 %v261, %v284
        %v289 = vmul.f32 %v256, 0.8864196
        %v290 = vmul.f32 %v257, 0.8864196
        %293 = vrot.lane.b32.xlu0 %v289, 2
        %v294 = vpop.permute.xlu0 %293
        %295 = vrot.lane.b32.xlu0 %v290, 2
        %v296 = vpop.permute.xlu0 %295
        %vm297 = vcmask 15360
        %v298 = vsel %vm297, %v294, %v296
        %v301 = vadd.f32 %v274, %v294
        %v302 = vadd.f32 %v275, %v298
        %v303 = vmul.f32 %v256, 0.25714523
        %v304 = vmul.f32 %v257, 0.25714523
        %307 = vrot.lane.b32.xlu0 %v303, 2
        %v308 = vpop.permute.xlu0 %307
        %309 = vrot.lane.b32.xlu0 %v304, 2
        %v310 = vpop.permute.xlu0 %309
        %v311 = vsel %vm297, %v308, %v310
        %v314 = vadd.f32 %v287, %v308
        %v315 = vadd.f32 %v288, %v311
        %316 = vrot.lane.b32.xlu0 %v303, 3
        %v317 = vpop.permute.xlu0 %316
        %318 = vrot.lane.b32.xlu0 %v304, 3
        %v319 = vpop.permute.xlu0 %318
        %vm320 = vcmask 23552
        %v321 = vsel %vm320, %v317, %v319
        %v324 = vadd.f32 %v301, %v317
        %v325 = vadd.f32 %v302, %v321
        %326 = vrot.lane.b32.xlu0 %v289, 3
        %v327 = vpop.permute.xlu0 %326
        %328 = vrot.lane.b32.xlu0 %v290, 3
        %v329 = vpop.permute.xlu0 %328
        %v330 = vsel %vm320, %v327, %v329
        %v333 = vadd.f32 %v314, %v327
        %v334 = vadd.f32 %v315, %v330
        %335 = vrot.lane.b32.xlu0 %v276, 4
        %v336 = vpop.permute.xlu0 %335
        %337 = vrot.lane.b32.xlu0 %v277, 4
        %v338 = vpop.permute.xlu0 %337
        %vm339 = vcmask 31744
        %v340 = vsel %vm339, %v336, %v338
        %v343 = vadd.f32 %v324, %v336
        %v344 = vadd.f32 %v325, %v340
        %345 = vrot.lane.b32.xlu0 %v262, 4
        %v346 = vpop.permute.xlu0 %345
        %347 = vrot.lane.b32.xlu0 %v263, 4
        %v348 = vpop.permute.xlu0 %347
        %v349 = vsel %vm339, %v346, %v348
        %v352 = vadd.f32 %v333, %v346
        %v353 = vadd.f32 %v334, %v349
        %356 = vrot.lane.b32.xlu0 %v260, 5
        %v357 = vpop.permute.xlu0 %356
        %358 = vrot.lane.b32.xlu0 %v261, 5
        %v359 = vpop.permute.xlu0 %358
        %v360 = vsel %vm255, %v357, %v359
        %v363 = vadd.f32 %v343, %v357
        %v364 = vadd.f32 %v344, %v360
        %367 = vrot.lane.b32.xlu0 %v258, 5
        %v368 = vpop.permute.xlu0 %367
        %369 = vrot.lane.b32.xlu0 %v259, 5
        %v370 = vpop.permute.xlu0 %369
        %v371 = vsel %vm255, %v368, %v370
        %v374 = vadd.f32 %v352, %v368
        %v375 = vadd.f32 %v353, %v371
        %377 = vset.pattern.permute.xlu0 0
        %378 = vperm.xlu0 %377, %v223
        %v379 = vpop.permute.xlu0 %378
        %v381 = vmul.f32 %v363, %v379
        %v382 = vmul.f32 %v364, %v379
        %v383 = vand.u32 2147483647, %v381
        %vm384 = vcmp.le.f32.partialorder %v383, 0.7853982
        %vm385 = vcmp.lt.s32.totalorder %v381, 0
        %v386 = vand.u32 %v381, 2139095040
        %v387 = vshrl.u32 %v386, 23
        %v388 = vsub.s32 %v387, 127
        %v389 = vand.u32 2147483647, %v381
        %v390 = vand.u32 %v389, 8388607
        %v391 = vor.u32 %v390, 8388608
        %v392 = vsub.s32 0, %v391
        %v393 = vadd.s32 %v388, 1
        %vm394 = vcmp.gt.s32.totalorder %v393, 0
        %v395 = vsel %vm394, %v393, 0
        %v396 = vshrl.u32 %v395, 5
        %v397 = vand.u32 %v395, 31
        %v398 = vsub.s32 32, %v397
        %v399 = vshrl.u32 683565275, %v398
        %v400 = vshll.u32 683565275, %v397
        %v401 = vshrl.u32 2475754826, %v398
        %v402 = vor.u32 %v400, %v401
        %v403 = vshll.u32 2475754826, %v397
        %v404 = vshrl.u32 2131351028, %v398
        %v405 = vor.u32 %v403, %v404
        %v406 = vshll.u32 2131351028, %v397
        %v407 = vshrl.u32 2102212464, %v398
        %v408 = vor.u32 %v406, %v407
        %v409 = vshll.u32 2102212464, %v397
        %v410 = vshrl.u32 920167782, %v398
        %v411 = vor.u32 %v409, %v410
        %v412 = vshll.u32 920167782, %v397
        %v413 = vshrl.u32 1326507024, %v398
        %v414 = vor.u32 %v412, %v413
        %vm415 = vcmp.lt.s32.totalorder %v396, 1
        %vm416 = vcmp.lt.s32.totalorder %v396, 2
        %vm417 = vcmp.lt.s32.totalorder %v396, 3
        %vm418 = vcmp.lt.s32.totalorder %v396, 4
        %v419 = vsel %vm415, %v399, %v402
        %v420 = vsel %vm418, %v408, 2102212464
        %v421 = vsel %vm417, %v405, %v420
        %v422 = vsel %vm416, %v419, %v421
        %v423 = vsel %vm415, %v402, %v405
        %v424 = vsel %vm418, %v411, 920167782
        %v425 = vsel %vm417, %v408, %v424
        %v426 = vsel %vm416, %v423, %v425
        %v427 = vsel %vm415, %v405, %v408
        %v428 = vsel %vm418, %v414, 1326507024
        %v429 = vsel %vm417, %v411, %v428
        %v430 = vsel %vm416, %v427, %v429
        %v431 = vshll.u32 %v391, 8
        %v432 = vand.u32 %v431, 65535
        %v433 = vshrl.u32 %v431, 16
        %v434 = vand.u32 %v430, 65535
        %v435 = vshrl.u32 %v430, 16
        %v436 = vmul.u32 %v432, %v434
        %v437 = vmul.u32 %v432, %v435
        %v438 = vmul.u32 %v433, %v434
        %v439 = vmul.u32 %v433, %v435
        %v440 = vshll.u32 %v437, 16
        %v441 = vshrl.u32 %v437, 16
        %v442 = vshll.u32 %v438, 16
        %v443 = vshrl.u32 %v438, 16
        %vm444 = vc.u32 %v436, %v440
        %v445 = vsel %vm444, 1, 0
        %v446 = vadd.s32 %v436, %v440
        %v447 = vadd.s32 %v439, %v445
        %vm448 = vc.u32 %v446, %v442
        %v449 = vsel %vm448, 1, 0
        %v450 = vadd.s32 %v446, %v442
        %v451 = vadd.s32 %v447, %v449
        %v452 = vadd.s32 %v451, %v441
        %v453 = vadd.s32 %v452, %v443
        %v454 = vand.u32 %v431, 65535
        %v455 = vshrl.u32 %v431, 16
        %v456 = vand.u32 %v426, 65535
        %v457 = vshrl.u32 %v426, 16
        %v458 = vmul.u32 %v454, %v456
        %v459 = vmul.u32 %v454, %v457
        %v460 = vmul.u32 %v455, %v456
        %v461 = vmul.u32 %v455, %v457
        %v462 = vshll.u32 %v459, 16
        %v463 = vshrl.u32 %v459, 16
        %v464 = vshll.u32 %v460, 16
        %v465 = vshrl.u32 %v460, 16
        %vm466 = vc.u32 %v458, %v462
        %v467 = vsel %vm466, 1, 0
        %v468 = vadd.s32 %v458, %v462
        %v469 = vadd.s32 %v461, %v467
        %vm470 = vc.u32 %v468, %v464
        %v471 = vsel %vm470, 1, 0
        %v472 = vadd.s32 %v468, %v464
        %v473 = vadd.s32 %v469, %v471
        %v474 = vadd.s32 %v473, %v463
        %v475 = vadd.s32 %v474, %v465
        %v476 = vmul.u32 %v431, %v422
        %v477 = vadd.s32 %v453, %v472
        %vm478 = vc.u32 %v453, %v472
        %v479 = vadd.s32 %v475, 1
        %v480 = vsel %vm478, %v479, %v475
        %v481 = vadd.s32 %v476, %v480
        %v482 = vadd.s32 %v481, 536870912
        %v483 = vshrl.u32 %v482, 30
        %v484 = vshll.u32 %v483, 30
        %v485 = vsub.s32 %v481, %v484
        %vm486 = vcmp.lt.s32.totalorder %v485, 0
        %v487 = vsub.s32 0, %v485
        %v488 = vsel %vm486, %v487, %v485
        %v489 = vclz %v488
        %v490 = vsub.s32 %v489, 2
        %vm491 = vcmp.gt.s32.totalorder 0, %v490
        %v492 = vsel %vm491, 0, %v490
        %v493 = vsub.s32 32, %v492
        %v494 = vshll.u32 %v485, %v492
        %v495 = vshrl.u32 %v477, %v493
        %v496 = vor.u32 %v494, %v495
        %v497 = vsub.s32 4294967266, %v492
        %v498 = vadd.s32 %v497, 127
        %v499 = vshll.u32 %v498, 23
        %v500 = vor.u32 4788187, %v499
        %v501 = vand.u32 2147483647, %v500
        %v503 = vcvt.s32.f32 %v496
        %v504 = vmul.f32 %v503, %v501
        %v505 = vxor.u32 %v504, 2147483648
        %v506 = vsel %vm385, %v505, %v504
        %v507 = vsub.s32 4, %v483
        %v508 = vsel %vm385, %v507, %v483
        %v509 = vsel %vm384, %v381, %v506
        %v510 = vsel %vm384, 0, %v508
        %v511 = vmul.f32 %v509, %v509
        %v512 = vmul.f32 %v511, -0.001358992
        %v513 = vadd.f32 %v512, 0.041655596
        %v514 = vmul.f32 %v511, %v513
        %v515 = vadd.f32 %v514, -0.4999988
        %v516 = vmul.f32 %v511, %v515
        %v517 = vadd.f32 1.0, %v516
        %v518 = vmul.f32 %v509, %v509
        %v519 = vmul.f32 %v518, -0.00019511016
        %v520 = vadd.f32 %v519, 0.008332121
        %v521 = vmul.f32 %v518, %v520
        %v522 = vadd.f32 %v521, -0.16666654
        %v523 = vmul.f32 %v518, %v522
        %v524 = vadd.f32 %v523, 1.0
        %v525 = vmul.f32 %v524, %v509
        %vm526 = vweird.f32 %v381
        %v527 = vadd.s32 %v510, 3
        %v528 = vand.u32 %v527, 3
        %vm529 = vcmp.lt.s32.totalorder %v528, 2
        %vm530 = vcmp.eq.s32.totalorder %v528, 0
        %v531 = vxor.u32 %v525, 2147483648
        %v532 = vsel %vm530, %v517, %v531
        %vm533 = vcmp.eq.s32.totalorder %v528, 2
        %v534 = vxor.u32 %v517, 2147483648
        %v535 = vsel %vm533, %v534, %v525
        %v536 = vsel %vm529, %v532, %v535
        %v537 = vsel %vm526, nan, %v536
        %v538 = vand.u32 2147483647, %v382
        %vm539 = vcmp.le.f32.partialorder %v538, 0.7853982
        %vm540 = vcmp.lt.s32.totalorder %v382, 0
        %v541 = vand.u32 %v382, 2139095040
        %v542 = vshrl.u32 %v541, 23
        %v543 = vsub.s32 %v542, 127
        %v544 = vand.u32 2147483647, %v382
        %v545 = vand.u32 %v544, 8388607
        %v546 = vor.u32 %v545, 8388608
        %v547 = vsub.s32 0, %v546
        %v548 = vadd.s32 %v543, 1
        %vm549 = vcmp.gt.s32.totalorder %v548, 0
        %v550 = vsel %vm549, %v548, 0
        %v551 = vshrl.u32 %v550, 5
        %v552 = vand.u32 %v550, 31
        %v553 = vsub.s32 32, %v552
        %v554 = vshrl.u32 683565275, %v553
        %v555 = vshll.u32 683565275, %v552
        %v556 = vshrl.u32 2475754826, %v553
        %v557 = vor.u32 %v555, %v556
        %v558 = vshll.u32 2475754826, %v552
        %v559 = vshrl.u32 2131351028, %v553
        %v560 = vor.u32 %v558, %v559
        %v561 = vshll.u32 2131351028, %v552
        %v562 = vshrl.u32 2102212464, %v553
        %v563 = vor.u32 %v561, %v562
        %v564 = vshll.u32 2102212464, %v552
        %v565 = vshrl.u32 920167782, %v553
        %v566 = vor.u32 %v564, %v565
        %v567 = vshll.u32 920167782, %v552
        %v568 = vshrl.u32 1326507024, %v553
        %v569 = vor.u32 %v567, %v568
        %vm570 = vcmp.lt.s32.totalorder %v551, 1
        %vm571 = vcmp.lt.s32.totalorder %v551, 2
        %vm572 = vcmp.lt.s32.totalorder %v551, 3
        %vm573 = vcmp.lt.s32.totalorder %v551, 4
        %v574 = vsel %vm570, %v554, %v557
        %v575 = vsel %vm573, %v563, 2102212464
        %v576 = vsel %vm572, %v560, %v575
        %v577 = vsel %vm571, %v574, %v576
        %v578 = vsel %vm570, %v557, %v560
        %v579 = vsel %vm573, %v566, 920167782
        %v580 = vsel %vm572, %v563, %v579
        %v581 = vsel %vm571, %v578, %v580
        %v582 = vsel %vm570, %v560, %v563
        %v583 = vsel %vm573, %v569, 1326507024
        %v584 = vsel %vm572, %v566, %v583
        %v585 = vsel %vm571, %v582, %v584
        %v586 = vshll.u32 %v546, 8
        %v587 = vand.u32 %v586, 65535
        %v588 = vshrl.u32 %v586, 16
        %v589 = vand.u32 %v585, 65535
        %v590 = vshrl.u32 %v585, 16
        %v591 = vmul.u32 %v587, %v589
        %v592 = vmul.u32 %v587, %v590
        %v593 = vmul.u32 %v588, %v589
        %v594 = vmul.u32 %v588, %v590
        %v595 = vshll.u32 %v592, 16
        %v596 = vshrl.u32 %v592, 16
        %v597 = vshll.u32 %v593, 16
        %v598 = vshrl.u32 %v593, 16
        %vm599 = vc.u32 %v591, %v595
        %v600 = vsel %vm599, 1, 0
        %v601 = vadd.s32 %v591, %v595
        %v602 = vadd.s32 %v594, %v600
        %vm603 = vc.u32 %v601, %v597
        %v604 = vsel %vm603, 1, 0
        %v605 = vadd.s32 %v601, %v597
        %v606 = vadd.s32 %v602, %v604
        %v607 = vadd.s32 %v606, %v596
        %v608 = vadd.s32 %v607, %v598
        %v609 = vand.u32 %v586, 65535
        %v610 = vshrl.u32 %v586, 16
        %v611 = vand.u32 %v581, 65535
        %v612 = vshrl.u32 %v581, 16
        %v613 = vmul.u32 %v609, %v611
        %v614 = vmul.u32 %v609, %v612
        %v615 = vmul.u32 %v610, %v611
        %v616 = vmul.u32 %v610, %v612
        %v617 = vshll.u32 %v614, 16
        %v618 = vshrl.u32 %v614, 16
        %v619 = vshll.u32 %v615, 16
        %v620 = vshrl.u32 %v615, 16
        %vm621 = vc.u32 %v613, %v617
        %v622 = vsel %vm621, 1, 0
        %v623 = vadd.s32 %v613, %v617
        %v624 = vadd.s32 %v616, %v622
        %vm625 = vc.u32 %v623, %v619
        %v626 = vsel %vm625, 1, 0
        %v627 = vadd.s32 %v623, %v619
        %v628 = vadd.s32 %v624, %v626
        %v629 = vadd.s32 %v628, %v618
        %v630 = vadd.s32 %v629, %v620
        %v631 = vmul.u32 %v586, %v577
        %v632 = vadd.s32 %v608, %v627
        %vm633 = vc.u32 %v608, %v627
        %v634 = vadd.s32 %v630, 1
        %v635 = vsel %vm633, %v634, %v630
        %v636 = vadd.s32 %v631, %v635
        %v637 = vadd.s32 %v636, 536870912
        %v638 = vshrl.u32 %v637, 30
        %v639 = vshll.u32 %v638, 30
        %v640 = vsub.s32 %v636, %v639
        %vm641 = vcmp.lt.s32.totalorder %v640, 0
        %v642 = vsub.s32 0, %v640
        %v643 = vsel %vm641, %v642, %v640
        %v644 = vclz %v643
        %v645 = vsub.s32 %v644, 2
        %vm646 = vcmp.gt.s32.totalorder 0, %v645
        %v647 = vsel %vm646, 0, %v645
        %v648 = vsub.s32 32, %v647
        %v649 = vshll.u32 %v640, %v647
        %v650 = vshrl.u32 %v632, %v648
        %v651 = vor.u32 %v649, %v650
        %v652 = vsub.s32 4294967266, %v647
        %v653 = vadd.s32 %v652, 127
        %v654 = vshll.u32 %v653, 23
        %v655 = vor.u32 4788187, %v654
        %v656 = vand.u32 2147483647, %v655
        %v658 = vcvt.s32.f32 %v651
        %v659 = vmul.f32 %v658, %v656
        %v660 = vxor.u32 %v659, 2147483648
        %v661 = vsel %vm540, %v660, %v659
        %v662 = vsub.s32 4, %v638
        %v663 = vsel %vm540, %v662, %v638
        %v664 = vsel %vm539, %v382, %v661
        %v665 = vsel %vm539, 0, %v663
        %v666 = vmul.f32 %v664, %v664
        %v667 = vmul.f32 %v666, -0.001358992
        %v668 = vadd.f32 %v667, 0.041655596
        %v669 = vmul.f32 %v666, %v668
        %v670 = vadd.f32 %v669, -0.4999988
        %v671 = vmul.f32 %v666, %v670
        %v672 = vadd.f32 1.0, %v671
        %v673 = vmul.f32 %v664, %v664
        %v674 = vmul.f32 %v673, -0.00019511016
        %v675 = vadd.f32 %v674, 0.008332121
        %v676 = vmul.f32 %v673, %v675
        %v677 = vadd.f32 %v676, -0.16666654
        %v678 = vmul.f32 %v673, %v677
        %v679 = vadd.f32 %v678, 1.0
        %v680 = vmul.f32 %v679, %v664
        %vm681 = vweird.f32 %v382
        %v682 = vadd.s32 %v665, 3
        %v683 = vand.u32 %v682, 3
        %vm684 = vcmp.lt.s32.totalorder %v683, 2
        %vm685 = vcmp.eq.s32.totalorder %v683, 0
        %v686 = vxor.u32 %v680, 2147483648
        %v687 = vsel %vm685, %v672, %v686
        %vm688 = vcmp.eq.s32.totalorder %v683, 2
        %v689 = vxor.u32 %v672, 2147483648
        %v690 = vsel %vm688, %v689, %v680
        %v691 = vsel %vm684, %v687, %v690
        %v692 = vsel %vm681, nan, %v691
        %v693 = vmul.f32 %v374, %v379
        %v694 = vmul.f32 %v375, %v379
        %v695 = vand.u32 2147483647, %v693
        %vm696 = vcmp.le.f32.partialorder %v695, 0.7853982
        %vm697 = vcmp.lt.s32.totalorder %v693, 0
        %v698 = vand.u32 %v693, 2139095040
        %v699 = vshrl.u32 %v698, 23
        %v700 = vsub.s32 %v699, 127
        %v701 = vand.u32 2147483647, %v693
        %v702 = vand.u32 %v701, 8388607
        %v703 = vor.u32 %v702, 8388608
        %v704 = vsub.s32 0, %v703
        %v705 = vadd.s32 %v700, 1
        %vm706 = vcmp.gt.s32.totalorder %v705, 0
        %v707 = vsel %vm706, %v705, 0
        %v708 = vshrl.u32 %v707, 5
        %v709 = vand.u32 %v707, 31
        %v710 = vsub.s32 32, %v709
        %v711 = vshrl.u32 683565275, %v710
        %v712 = vshll.u32 683565275, %v709
        %v713 = vshrl.u32 2475754826, %v710
        %v714 = vor.u32 %v712, %v713
        %v715 = vshll.u32 2475754826, %v709
        %v716 = vshrl.u32 2131351028, %v710
        %v717 = vor.u32 %v715, %v716
        %v718 = vshll.u32 2131351028, %v709
        %v719 = vshrl.u32 2102212464, %v710
        %v720 = vor.u32 %v718, %v719
        %v721 = vshll.u32 2102212464, %v709
        %v722 = vshrl.u32 920167782, %v710
        %v723 = vor.u32 %v721, %v722
        %v724 = vshll.u32 920167782, %v709
        %v725 = vshrl.u32 1326507024, %v710
        %v726 = vor.u32 %v724, %v725
        %vm727 = vcmp.lt.s32.totalorder %v708, 1
        %vm728 = vcmp.lt.s32.totalorder %v708, 2
        %vm729 = vcmp.lt.s32.totalorder %v708, 3
        %vm730 = vcmp.lt.s32.totalorder %v708, 4
        %v731 = vsel %vm727, %v711, %v714
        %v732 = vsel %vm730, %v720, 2102212464
        %v733 = vsel %vm729, %v717, %v732
        %v734 = vsel %vm728, %v731, %v733
        %v735 = vsel %vm727, %v714, %v717
        %v736 = vsel %vm730, %v723, 920167782
        %v737 = vsel %vm729, %v720, %v736
        %v738 = vsel %vm728, %v735, %v737
        %v739 = vsel %vm727, %v717, %v720
        %v740 = vsel %vm730, %v726, 1326507024
        %v741 = vsel %vm729, %v723, %v740
        %v742 = vsel %vm728, %v739, %v741
        %v743 = vshll.u32 %v703, 8
        %v744 = vand.u32 %v743, 65535
        %v745 = vshrl.u32 %v743, 16
        %v746 = vand.u32 %v742, 65535
        %v747 = vshrl.u32 %v742, 16
        %v748 = vmul.u32 %v744, %v746
        %v749 = vmul.u32 %v744, %v747
        %v750 = vmul.u32 %v745, %v746
        %v751 = vmul.u32 %v745, %v747
        %v752 = vshll.u32 %v749, 16
        %v753 = vshrl.u32 %v749, 16
        %v754 = vshll.u32 %v750, 16
        %v755 = vshrl.u32 %v750, 16
        %vm756 = vc.u32 %v748, %v752
        %v757 = vsel %vm756, 1, 0
        %v758 = vadd.s32 %v748, %v752
        %v759 = vadd.s32 %v751, %v757
        %vm760 = vc.u32 %v758, %v754
        %v761 = vsel %vm760, 1, 0
        %v762 = vadd.s32 %v758, %v754
        %v763 = vadd.s32 %v759, %v761
        %v764 = vadd.s32 %v763, %v753
        %v765 = vadd.s32 %v764, %v755
        %v766 = vand.u32 %v743, 65535
        %v767 = vshrl.u32 %v743, 16
        %v768 = vand.u32 %v738, 65535
        %v769 = vshrl.u32 %v738, 16
        %v770 = vmul.u32 %v766, %v768
        %v771 = vmul.u32 %v766, %v769
        %v772 = vmul.u32 %v767, %v768
        %v773 = vmul.u32 %v767, %v769
        %v774 = vshll.u32 %v771, 16
        %v775 = vshrl.u32 %v771, 16
        %v776 = vshll.u32 %v772, 16
        %v777 = vshrl.u32 %v772, 16
        %vm778 = vc.u32 %v770, %v774
        %v779 = vsel %vm778, 1, 0
        %v780 = vadd.s32 %v770, %v774
        %v781 = vadd.s32 %v773, %v779
        %vm782 = vc.u32 %v780, %v776
        %v783 = vsel %vm782, 1, 0
        %v784 = vadd.s32 %v780, %v776
        %v785 = vadd.s32 %v781, %v783
        %v786 = vadd.s32 %v785, %v775
        %v787 = vadd.s32 %v786, %v777
        %v788 = vmul.u32 %v743, %v734
        %v789 = vadd.s32 %v765, %v784
        %vm790 = vc.u32 %v765, %v784
        %v791 = vadd.s32 %v787, 1
        %v792 = vsel %vm790, %v791, %v787
        %v793 = vadd.s32 %v788, %v792
        %v794 = vadd.s32 %v793, 536870912
        %v795 = vshrl.u32 %v794, 30
        %v796 = vshll.u32 %v795, 30
        %v797 = vsub.s32 %v793, %v796
        %vm798 = vcmp.lt.s32.totalorder %v797, 0
        %v799 = vsub.s32 0, %v797
        %v800 = vsel %vm798, %v799, %v797
        %v801 = vclz %v800
        %v802 = vsub.s32 %v801, 2
        %vm803 = vcmp.gt.s32.totalorder 0, %v802
        %v804 = vsel %vm803, 0, %v802
        %v805 = vsub.s32 32, %v804
        %v806 = vshll.u32 %v797, %v804
        %v807 = vshrl.u32 %v789, %v805
        %v808 = vor.u32 %v806, %v807
        %v809 = vsub.s32 4294967266, %v804
        %v810 = vadd.s32 %v809, 127
        %v811 = vshll.u32 %v810, 23
        %v812 = vor.u32 4788187, %v811
        %v813 = vand.u32 2147483647, %v812
        %v815 = vcvt.s32.f32 %v808
        %v816 = vmul.f32 %v815, %v813
        %v817 = vxor.u32 %v816, 2147483648
        %v818 = vsel %vm697, %v817, %v816
        %v819 = vsub.s32 4, %v795
        %v820 = vsel %vm697, %v819, %v795
        %v821 = vsel %vm696, %v693, %v818
        %v822 = vsel %vm696, 0, %v820
        %v823 = vmul.f32 %v821, %v821
        %v824 = vmul.f32 %v823, -0.001358992
        %v825 = vadd.f32 %v824, 0.041655596
        %v826 = vmul.f32 %v823, %v825
        %v827 = vadd.f32 %v826, -0.4999988
        %v828 = vmul.f32 %v823, %v827
        %v829 = vadd.f32 1.0, %v828
        %v830 = vmul.f32 %v821, %v821
        %v831 = vmul.f32 %v830, -0.00019511016
        %v832 = vadd.f32 %v831, 0.008332121
        %v833 = vmul.f32 %v830, %v832
        %v834 = vadd.f32 %v833, -0.16666654
        %v835 = vmul.f32 %v830, %v834
        %v836 = vadd.f32 %v835, 1.0
        %v837 = vmul.f32 %v836, %v821
        %vm838 = vweird.f32 %v693
        %v839 = vadd.s32 %v822, 3
        %v840 = vand.u32 %v839, 3
        %vm841 = vcmp.lt.s32.totalorder %v840, 2
        %vm842 = vcmp.eq.s32.totalorder %v840, 0
        %v843 = vxor.u32 %v837, 2147483648
        %v844 = vsel %vm842, %v829, %v843
        %vm845 = vcmp.eq.s32.totalorder %v840, 2
        %v846 = vxor.u32 %v829, 2147483648
        %v847 = vsel %vm845, %v846, %v837
        %v848 = vsel %vm841, %v844, %v847
        %v849 = vsel %vm838, nan, %v848
        %v850 = vand.u32 2147483647, %v694
        %vm851 = vcmp.le.f32.partialorder %v850, 0.7853982
        %vm852 = vcmp.lt.s32.totalorder %v694, 0
        %v853 = vand.u32 %v694, 2139095040
        %v854 = vshrl.u32 %v853, 23
        %v855 = vsub.s32 %v854, 127
        %v856 = vand.u32 2147483647, %v694
        %v857 = vand.u32 %v856, 8388607
        %v858 = vor.u32 %v857, 8388608
        %v859 = vsub.s32 0, %v858
        %v860 = vadd.s32 %v855, 1
        %vm861 = vcmp.gt.s32.totalorder %v860, 0
        %v862 = vsel %vm861, %v860, 0
        %v863 = vshrl.u32 %v862, 5
        %v864 = vand.u32 %v862, 31
        %v865 = vsub.s32 32, %v864
        %v866 = vshrl.u32 683565275, %v865
        %v867 = vshll.u32 683565275, %v864
        %v868 = vshrl.u32 2475754826, %v865
        %v869 = vor.u32 %v867, %v868
        %v870 = vshll.u32 2475754826, %v864
        %v871 = vshrl.u32 2131351028, %v865
        %v872 = vor.u32 %v870, %v871
        %v873 = vshll.u32 2131351028, %v864
        %v874 = vshrl.u32 2102212464, %v865
        %v875 = vor.u32 %v873, %v874
        %v876 = vshll.u32 2102212464, %v864
        %v877 = vshrl.u32 920167782, %v865
        %v878 = vor.u32 %v876, %v877
        %v879 = vshll.u32 920167782, %v864
        %v880 = vshrl.u32 1326507024, %v865
        %v881 = vor.u32 %v879, %v880
        %vm882 = vcmp.lt.s32.totalorder %v863, 1
        %vm883 = vcmp.lt.s32.totalorder %v863, 2
        %vm884 = vcmp.lt.s32.totalorder %v863, 3
        %vm885 = vcmp.lt.s32.totalorder %v863, 4
        %v886 = vsel %vm882, %v866, %v869
        %v887 = vsel %vm885, %v875, 2102212464
        %v888 = vsel %vm884, %v872, %v887
        %v889 = vsel %vm883, %v886, %v888
        %v890 = vsel %vm882, %v869, %v872
        %v891 = vsel %vm885, %v878, 920167782
        %v892 = vsel %vm884, %v875, %v891
        %v893 = vsel %vm883, %v890, %v892
        %v894 = vsel %vm882, %v872, %v875
        %v895 = vsel %vm885, %v881, 1326507024
        %v896 = vsel %vm884, %v878, %v895
        %v897 = vsel %vm883, %v894, %v896
        %v898 = vshll.u32 %v858, 8
        %v899 = vand.u32 %v898, 65535
        %v900 = vshrl.u32 %v898, 16
        %v901 = vand.u32 %v897, 65535
        %v902 = vshrl.u32 %v897, 16
        %v903 = vmul.u32 %v899, %v901
        %v904 = vmul.u32 %v899, %v902
        %v905 = vmul.u32 %v900, %v901
        %v906 = vmul.u32 %v900, %v902
        %v907 = vshll.u32 %v904, 16
        %v908 = vshrl.u32 %v904, 16
        %v909 = vshll.u32 %v905, 16
        %v910 = vshrl.u32 %v905, 16
        %vm911 = vc.u32 %v903, %v907
        %v912 = vsel %vm911, 1, 0
        %v913 = vadd.s32 %v903, %v907
        %v914 = vadd.s32 %v906, %v912
        %vm915 = vc.u32 %v913, %v909
        %v916 = vsel %vm915, 1, 0
        %v917 = vadd.s32 %v913, %v909
        %v918 = vadd.s32 %v914, %v916
        %v919 = vadd.s32 %v918, %v908
        %v920 = vadd.s32 %v919, %v910
        %v921 = vand.u32 %v898, 65535
        %v922 = vshrl.u32 %v898, 16
        %v923 = vand.u32 %v893, 65535
        %v924 = vshrl.u32 %v893, 16
        %v925 = vmul.u32 %v921, %v923
        %v926 = vmul.u32 %v921, %v924
        %v927 = vmul.u32 %v922, %v923
        %v928 = vmul.u32 %v922, %v924
        %v929 = vshll.u32 %v926, 16
        %v930 = vshrl.u32 %v926, 16
        %v931 = vshll.u32 %v927, 16
        %v932 = vshrl.u32 %v927, 16
        %vm933 = vc.u32 %v925, %v929
        %v934 = vsel %vm933, 1, 0
        %v935 = vadd.s32 %v925, %v929
        %v936 = vadd.s32 %v928, %v934
        %vm937 = vc.u32 %v935, %v931
        %v938 = vsel %vm937, 1, 0
        %v939 = vadd.s32 %v935, %v931
        %v940 = vadd.s32 %v936, %v938
        %v941 = vadd.s32 %v940, %v930
        %v942 = vadd.s32 %v941, %v932
        %v943 = vmul.u32 %v898, %v889
        %v944 = vadd.s32 %v920, %v939
        %vm945 = vc.u32 %v920, %v939
        %v946 = vadd.s32 %v942, 1
        %v947 = vsel %vm945, %v946, %v942
        %v948 = vadd.s32 %v943, %v947
        %v949 = vadd.s32 %v948, 536870912
        %v950 = vshrl.u32 %v949, 30
        %v951 = vshll.u32 %v950, 30
        %v952 = vsub.s32 %v948, %v951
        %vm953 = vcmp.lt.s32.totalorder %v952, 0
        %v954 = vsub.s32 0, %v952
        %v955 = vsel %vm953, %v954, %v952
        %v956 = vclz %v955
        %v957 = vsub.s32 %v956, 2
        %vm958 = vcmp.gt.s32.totalorder 0, %v957
        %v959 = vsel %vm958, 0, %v957
        %v960 = vsub.s32 32, %v959
        %v961 = vshll.u32 %v952, %v959
        %v962 = vshrl.u32 %v944, %v960
        %v963 = vor.u32 %v961, %v962
        %v964 = vsub.s32 4294967266, %v959
        %v965 = vadd.s32 %v964, 127
        %v966 = vshll.u32 %v965, 23
        %v967 = vor.u32 4788187, %v966
        %v968 = vand.u32 2147483647, %v967
        %v970 = vcvt.s32.f32 %v963
        %v971 = vmul.f32 %v970, %v968
        %v972 = vxor.u32 %v971, 2147483648
        %v973 = vsel %vm852, %v972, %v971
        %v974 = vsub.s32 4, %v950
        %v975 = vsel %vm852, %v974, %v950
        %v976 = vsel %vm851, %v694, %v973
        %v977 = vsel %vm851, 0, %v975
        %v978 = vmul.f32 %v976, %v976
        %v979 = vmul.f32 %v978, -0.001358992
        %v980 = vadd.f32 %v979, 0.041655596
        %v981 = vmul.f32 %v978, %v980
        %v982 = vadd.f32 %v981, -0.4999988
        %v983 = vmul.f32 %v978, %v982
        %v984 = vadd.f32 1.0, %v983
        %v985 = vmul.f32 %v976, %v976
        %v986 = vmul.f32 %v985, -0.00019511016
        %v987 = vadd.f32 %v986, 0.008332121
        %v988 = vmul.f32 %v985, %v987
        %v989 = vadd.f32 %v988, -0.16666654
        %v990 = vmul.f32 %v985, %v989
        %v991 = vadd.f32 %v990, 1.0
        %v992 = vmul.f32 %v991, %v976
        %vm993 = vweird.f32 %v694
        %v994 = vadd.s32 %v977, 3
        %v995 = vand.u32 %v994, 3
        %vm996 = vcmp.lt.s32.totalorder %v995, 2
        %vm997 = vcmp.eq.s32.totalorder %v995, 0
        %v998 = vxor.u32 %v992, 2147483648
        %v999 = vsel %vm997, %v984, %v998
        %vm1000 = vcmp.eq.s32.totalorder %v995, 2
        %v1001 = vxor.u32 %v984, 2147483648
        %v1002 = vsel %vm1000, %v1001, %v992
        %v1003 = vsel %vm996, %v999, %v1002
        %v1004 = vsel %vm993, nan, %v1003
        %1006 = vset.pattern.permute.xlu0 0
        %1007 = vperm.xlu0 %1006, %v242
        %v1008 = vpop.permute.xlu0 %1007
        %v1010 = vmul.f32 %v1008, %v537
        %v1011 = vmul.f32 %v1008, %v692
        %v1012 = vmul.f32 %v1010, %v537
        %v1013 = vmul.f32 %v1011, %v692
        %v1014 = vadd.f32 %v363, %v1012
        %v1015 = vadd.f32 %v364, %v1013
        %v1016 = vmul.f32 %v1008, %v849
        %v1017 = vmul.f32 %v1008, %v1004
        %v1018 = vmul.f32 %v1016, %v849
        %v1019 = vmul.f32 %v1017, %v1004
        %v1020 = vadd.f32 %v374, %v1018
        %v1021 = vadd.f32 %v375, %v1019
        %1023 = vset.pattern.permute.xlu0 7
        %1024 = vperm.xlu0 %1023, %v1014
        %v1025 = vpop.permute.xlu0 %1024
        %1028 = vset.pattern.permute.xlu0 7
        %1029 = vperm.xlu0 %1028, %v1021
        %v1030 = vpop.permute.xlu0 %1029
        %1033 = vrot.lane.b32.xlu0 %v1014, 123
        %v1034 = vpop.permute.xlu0 %1033
        %1035 = vrot.lane.b32.xlu0 %v1015, 123
        %v1036 = vpop.permute.xlu0 %1035
        %vm1037 = vcmask 1006592
        %v1038 = vsel %vm1037, %v1034, %v1036
        %v1041 = vsel %vm297, %v1025, %v1038
        %v1042 = vsel %vm297, %v1036, %v1030
        %1044 = vrot.lane.b32.xlu0 %v1020, 123
        %v1045 = vpop.permute.xlu0 %1044
        %1046 = vrot.lane.b32.xlu0 %v1021, 123
        %v1047 = vpop.permute.xlu0 %1046
        %v1048 = vsel %vm1037, %v1045, %v1047
        %v1051 = vsel %vm320, %v1025, %v1048
        %v1052 = vsel %vm320, %v1047, %v1030
        %v1053 = vmul.f32 %v1041, 0.009389464
        %v1054 = vmul.f32 %v1051, 0.0020289666
        %v1055 = vadd.f32 %v1053, %v1054
        %v1056 = vmul.f32 %v1041, -0.057657376
        %v1057 = vmul.f32 %v1042, -0.057657376
        %1060 = vrot.lane.b32.xlu0 %v1056, 127
        %v1061 = vpop.permute.xlu0 %1060
        %1062 = vrot.lane.b32.xlu0 %v1057, 127
        %v1063 = vpop.permute.xlu0 %1062
        %vm1064 = vcmask 1039360
        %v1065 = vsel %vm1064, %v1061, %v1063
        %v1067 = vadd.f32 %v1055, %v1065
        %v1068 = vmul.f32 %v1051, -0.025543464
        %v1069 = vmul.f32 %v1052, -0.025543464
        %1072 = vrot.lane.b32.xlu0 %v1068, 127
        %v1073 = vpop.permute.xlu0 %1072
        %1074 = vrot.lane.b32.xlu0 %v1069, 127
        %v1075 = vpop.permute.xlu0 %1074
        %v1076 = vsel %vm1064, %v1073, %v1075
        %v1078 = vadd.f32 %v1067, %v1076
        %v1079 = vmul.f32 %v1041, 0.4432098
        %v1080 = vmul.f32 %v1042, 0.4432098
        %1083 = vrot.lane.b32.xlu0 %v1079, 126
        %v1084 = vpop.permute.xlu0 %1083
        %1085 = vrot.lane.b32.xlu0 %v1080, 126
        %v1086 = vpop.permute.xlu0 %1085
        %vm1087 = vcmask 1031168
        %v1088 = vsel %vm1087, %v1084, %v1086
        %v1090 = vadd.f32 %v1078, %v1088
        %v1091 = vmul.f32 %v1051, 0.12857261
        %v1092 = vmul.f32 %v1052, 0.12857261
        %1095 = vrot.lane.b32.xlu0 %v1091, 126
        %v1096 = vpop.permute.xlu0 %1095
        %1097 = vrot.lane.b32.xlu0 %v1092, 126
        %v1098 = vpop.permute.xlu0 %1097
        %v1099 = vsel %vm1087, %v1096, %v1098
        %v1101 = vadd.f32 %v1090, %v1099
        %v1102 = vmul.f32 %v1041, 0.12857261
        %v1103 = vmul.f32 %v1042, 0.12857261
        %1106 = vrot.lane.b32.xlu0 %v1102, 125
        %v1107 = vpop.permute.xlu0 %1106
        %1108 = vrot.lane.b32.xlu0 %v1103, 125
        %v1109 = vpop.permute.xlu0 %1108
        %vm1110 = vcmask 1022976
        %v1111 = vsel %vm1110, %v1107, %v1109
        %v1113 = vadd.f32 %v1101, %v1111
        %v1114 = vmul.f32 %v1051, 0.4432098
        %v1115 = vmul.f32 %v1052, 0.4432098
        %1118 = vrot.lane.b32.xlu0 %v1114, 125
        %v1119 = vpop.permute.xlu0 %1118
        %1120 = vrot.lane.b32.xlu0 %v1115, 125
        %v1121 = vpop.permute.xlu0 %1120
        %v1122 = vsel %vm1110, %v1119, %v1121
        %v1124 = vadd.f32 %v1113, %v1122
        %v1125 = vmul.f32 %v1041, -0.025543464
        %v1126 = vmul.f32 %v1042, -0.025543464
        %1129 = vrot.lane.b32.xlu0 %v1125, 124
        %v1130 = vpop.permute.xlu0 %1129
        %1131 = vrot.lane.b32.xlu0 %v1126, 124
        %v1132 = vpop.permute.xlu0 %1131
        %vm1133 = vcmask 1014784
        %v1134 = vsel %vm1133, %v1130, %v1132
        %v1136 = vadd.f32 %v1124, %v1134
        %v1137 = vmul.f32 %v1051, -0.057657376
        %v1138 = vmul.f32 %v1052, -0.057657376
        %1141 = vrot.lane.b32.xlu0 %v1137, 124
        %v1142 = vpop.permute.xlu0 %1141
        %1143 = vrot.lane.b32.xlu0 %v1138, 124
        %v1144 = vpop.permute.xlu0 %1143
        %v1145 = vsel %vm1133, %v1142, %v1144
        %v1147 = vadd.f32 %v1136, %v1145
        %v1148 = vmul.f32 %v1041, 0.0020289666
        %v1149 = vmul.f32 %v1042, 0.0020289666
        %1152 = vrot.lane.b32.xlu0 %v1148, 123
        %v1153 = vpop.permute.xlu0 %1152
        %1154 = vrot.lane.b32.xlu0 %v1149, 123
        %v1155 = vpop.permute.xlu0 %1154
        %v1156 = vsel %vm1037, %v1153, %v1155
        %v1158 = vadd.f32 %v1147, %v1156
        %v1159 = vmul.f32 %v1051, 0.009389464
        %v1160 = vmul.f32 %v1052, 0.009389464
        %1163 = vrot.lane.b32.xlu0 %v1159, 123
        %v1164 = vpop.permute.xlu0 %1163
        %1165 = vrot.lane.b32.xlu0 %v1160, 123
        %v1166 = vpop.permute.xlu0 %1165
        %v1167 = vsel %vm1037, %v1164, %v1166
        %v1169 = vadd.f32 %v1158, %v1167
        %1171 = vrot.lane.b32.xlu0 %v1169, 1
        %v1172 = vpop.permute.xlu0 %1171
        %v1174 = vsel %vm270, 0.0, %v1172
        %1175 = vrot.lane.b32.xlu0 %v1169, 127
        %v1176 = vpop.permute.xlu0 %1175
        %v1178 = vsel %vm1064, %v1176, 0.0
        %v1179 = vld [vmem:[%s3] sm:$0xff]
        %v1180 = vld [vmem:[%s4] sm:$0xff]
        %1182 = vset.pattern.permute.xlu0 0
        %1183 = vperm.xlu0 %1182, %v1180
        %v1184 = vpop.permute.xlu0 %1183
        %vm1186 = vcmask 195584
        %v1188 = vsel %vm1186, %v1179, 0
        %1190 = vmatpush.msra.mxu0 0.0
        %1191 = vmatpush.msra.mxu0 0.0
        %1192 = vmatpush.msra.mxu0 0.0
        %1193 = vmatpush.msra.mxu0 0.0
        %1194 = vmatpush.msra.mxu0 0.0
        %1195 = vmatpush.msra.mxu0 0.0
        %1196 = vmatpush.msra.mxu0 0.0
        %1197 = vmatpush.msra.mxu0 0.0
        %1198 = vmatpush.msra.mxu0 0.0
        %1199 = vmatpush.msra.mxu0 0.0
        %1200 = vmatpush.msra.mxu0 0.0
        %1201 = vmatpush.msra.mxu0 0.0
        %1202 = vmatpush.msra.mxu0 0.0
        %1203 = vmatpush.msra.mxu0 %v1178
        %1204 = vmatpush.msra.mxu0 %v1169
        %1205 = vmatpush.msra.mxu0 %v1174
        %1206 = vmatmul.f32.gmra.mxu0 %v1188
        %v1207 = vpop.f32.mrf.mxu0
        %v1208 = vadd.f32 %v1184, %v1207
        %1209 = vdwg.mxu0
        %v1210 = vadd.f32 %v220, %v1208
        %1212 = vset.pattern.permute.xlu0 0
        %1213 = vperm.xlu0 %1212, %v1210
        %v1214 = vpop.permute.xlu0 %1213
        %1216 = vset.pattern.permute.xlu0 127
        %1217 = vperm.xlu0 %1216, %v1210
        %v1218 = vpop.permute.xlu0 %1217
        %1220 = vrot.lane.b32.xlu0 %v1210, 5
        %v1221 = vpop.permute.xlu0 %1220
        %v1223 = vsel %vm255, %v1214, %v1221
        %v1224 = vsel %vm255, %v1221, %v1218
        %v1225 = vmul.f32 %v1223, 0.018778928
        %v1226 = vmul.f32 %v1224, 0.018778928
        %v1227 = vmul.f32 %v1223, 0.004057933
        %v1228 = vmul.f32 %v1224, 0.004057933
        %v1229 = vmul.f32 %v1223, -0.11531475
        %v1230 = vmul.f32 %v1224, -0.11531475
        %1233 = vrot.lane.b32.xlu0 %v1229, 1
        %v1234 = vpop.permute.xlu0 %1233
        %1235 = vrot.lane.b32.xlu0 %v1230, 1
        %v1236 = vpop.permute.xlu0 %1235
        %v1237 = vsel %vm270, %v1234, %v1236
        %v1240 = vadd.f32 %v1225, %v1234
        %v1241 = vadd.f32 %v1226, %v1237
        %v1242 = vmul.f32 %v1223, -0.05108693
        %v1243 = vmul.f32 %v1224, -0.05108693
        %1246 = vrot.lane.b32.xlu0 %v1242, 1
        %v1247 = vpop.permute.xlu0 %1246
        %1248 = vrot.lane.b32.xlu0 %v1243, 1
        %v1249 = vpop.permute.xlu0 %1248
        %v1250 = vsel %vm270, %v1247, %v1249
        %v1253 = vadd.f32 %v1227, %v1247
        %v1254 = vadd.f32 %v1228, %v1250
        %v1255 = vmul.f32 %v1223, 0.8864196
        %v1256 = vmul.f32 %v1224, 0.8864196
        %1259 = vrot.lane.b32.xlu0 %v1255, 2
        %v1260 = vpop.permute.xlu0 %1259
        %1261 = vrot.lane.b32.xlu0 %v1256, 2
        %v1262 = vpop.permute.xlu0 %1261
        %v1263 = vsel %vm297, %v1260, %v1262
        %v1266 = vadd.f32 %v1240, %v1260
        %v1267 = vadd.f32 %v1241, %v1263
        %v1268 = vmul.f32 %v1223, 0.25714523
        %v1269 = vmul.f32 %v1224, 0.25714523
        %1272 = vrot.lane.b32.xlu0 %v1268, 2
        %v1273 = vpop.permute.xlu0 %1272
        %1274 = vrot.lane.b32.xlu0 %v1269, 2
        %v1275 = vpop.permute.xlu0 %1274
        %v1276 = vsel %vm297, %v1273, %v1275
        %v1279 = vadd.f32 %v1253, %v1273
        %v1280 = vadd.f32 %v1254, %v1276
        %1281 = vrot.lane.b32.xlu0 %v1268, 3
        %v1282 = vpop.permute.xlu0 %1281
        %1283 = vrot.lane.b32.xlu0 %v1269, 3
        %v1284 = vpop.permute.xlu0 %1283
        %v1285 = vsel %vm320, %v1282, %v1284
        %v1288 = vadd.f32 %v1266, %v1282
        %v1289 = vadd.f32 %v1267, %v1285
        %1290 = vrot.lane.b32.xlu0 %v1255, 3
        %v1291 = vpop.permute.xlu0 %1290
        %1292 = vrot.lane.b32.xlu0 %v1256, 3
        %v1293 = vpop.permute.xlu0 %1292
        %v1294 = vsel %vm320, %v1291, %v1293
        %v1297 = vadd.f32 %v1279, %v1291
        %v1298 = vadd.f32 %v1280, %v1294
        %1299 = vrot.lane.b32.xlu0 %v1242, 4
        %v1300 = vpop.permute.xlu0 %1299
        %1301 = vrot.lane.b32.xlu0 %v1243, 4
        %v1302 = vpop.permute.xlu0 %1301
        %v1303 = vsel %vm339, %v1300, %v1302
        %v1306 = vadd.f32 %v1288, %v1300
        %v1307 = vadd.f32 %v1289, %v1303
        %1308 = vrot.lane.b32.xlu0 %v1229, 4
        %v1309 = vpop.permute.xlu0 %1308
        %1310 = vrot.lane.b32.xlu0 %v1230, 4
        %v1311 = vpop.permute.xlu0 %1310
        %v1312 = vsel %vm339, %v1309, %v1311
        %v1315 = vadd.f32 %v1297, %v1309
        %v1316 = vadd.f32 %v1298, %v1312
        %1319 = vrot.lane.b32.xlu0 %v1227, 5
        %v1320 = vpop.permute.xlu0 %1319
        %1321 = vrot.lane.b32.xlu0 %v1228, 5
        %v1322 = vpop.permute.xlu0 %1321
        %v1323 = vsel %vm255, %v1320, %v1322
        %v1326 = vadd.f32 %v1306, %v1320
        %v1327 = vadd.f32 %v1307, %v1323
        %1330 = vrot.lane.b32.xlu0 %v1225, 5
        %v1331 = vpop.permute.xlu0 %1330
        %1332 = vrot.lane.b32.xlu0 %v1226, 5
        %v1333 = vpop.permute.xlu0 %1332
        %v1334 = vsel %vm255, %v1331, %v1333
        %v1337 = vadd.f32 %v1315, %v1331
        %v1338 = vadd.f32 %v1316, %v1334
        %v1339 = vmul.f32 %v1326, %v379
        %v1340 = vmul.f32 %v1327, %v379
        %v1341 = vand.u32 2147483647, %v1339
        %vm1342 = vcmp.le.f32.partialorder %v1341, 0.7853982
        %vm1343 = vcmp.lt.s32.totalorder %v1339, 0
        %v1344 = vand.u32 %v1339, 2139095040
        %v1345 = vshrl.u32 %v1344, 23
        %v1346 = vsub.s32 %v1345, 127
        %v1347 = vand.u32 2147483647, %v1339
        %v1348 = vand.u32 %v1347, 8388607
        %v1349 = vor.u32 %v1348, 8388608
        %v1350 = vsub.s32 0, %v1349
        %v1351 = vadd.s32 %v1346, 1
        %vm1352 = vcmp.gt.s32.totalorder %v1351, 0
        %v1353 = vsel %vm1352, %v1351, 0
        %v1354 = vshrl.u32 %v1353, 5
        %v1355 = vand.u32 %v1353, 31
        %v1356 = vsub.s32 32, %v1355
        %v1357 = vshrl.u32 683565275, %v1356
        %v1358 = vshll.u32 683565275, %v1355
        %v1359 = vshrl.u32 2475754826, %v1356
        %v1360 = vor.u32 %v1358, %v1359
        %v1361 = vshll.u32 2475754826, %v1355
        %v1362 = vshrl.u32 2131351028, %v1356
        %v1363 = vor.u32 %v1361, %v1362
        %v1364 = vshll.u32 2131351028, %v1355
        %v1365 = vshrl.u32 2102212464, %v1356
        %v1366 = vor.u32 %v1364, %v1365
        %v1367 = vshll.u32 2102212464, %v1355
        %v1368 = vshrl.u32 920167782, %v1356
        %v1369 = vor.u32 %v1367, %v1368
        %v1370 = vshll.u32 920167782, %v1355
        %v1371 = vshrl.u32 1326507024, %v1356
        %v1372 = vor.u32 %v1370, %v1371
        %vm1373 = vcmp.lt.s32.totalorder %v1354, 1
        %vm1374 = vcmp.lt.s32.totalorder %v1354, 2
        %vm1375 = vcmp.lt.s32.totalorder %v1354, 3
        %vm1376 = vcmp.lt.s32.totalorder %v1354, 4
        %v1377 = vsel %vm1373, %v1357, %v1360
        %v1378 = vsel %vm1376, %v1366, 2102212464
        %v1379 = vsel %vm1375, %v1363, %v1378
        %v1380 = vsel %vm1374, %v1377, %v1379
        %v1381 = vsel %vm1373, %v1360, %v1363
        %v1382 = vsel %vm1376, %v1369, 920167782
        %v1383 = vsel %vm1375, %v1366, %v1382
        %v1384 = vsel %vm1374, %v1381, %v1383
        %v1385 = vsel %vm1373, %v1363, %v1366
        %v1386 = vsel %vm1376, %v1372, 1326507024
        %v1387 = vsel %vm1375, %v1369, %v1386
        %v1388 = vsel %vm1374, %v1385, %v1387
        %v1389 = vshll.u32 %v1349, 8
        %v1390 = vand.u32 %v1389, 65535
        %v1391 = vshrl.u32 %v1389, 16
        %v1392 = vand.u32 %v1388, 65535
        %v1393 = vshrl.u32 %v1388, 16
        %v1394 = vmul.u32 %v1390, %v1392
        %v1395 = vmul.u32 %v1390, %v1393
        %v1396 = vmul.u32 %v1391, %v1392
        %v1397 = vmul.u32 %v1391, %v1393
        %v1398 = vshll.u32 %v1395, 16
        %v1399 = vshrl.u32 %v1395, 16
        %v1400 = vshll.u32 %v1396, 16
        %v1401 = vshrl.u32 %v1396, 16
        %vm1402 = vc.u32 %v1394, %v1398
        %v1403 = vsel %vm1402, 1, 0
        %v1404 = vadd.s32 %v1394, %v1398
        %v1405 = vadd.s32 %v1397, %v1403
        %vm1406 = vc.u32 %v1404, %v1400
        %v1407 = vsel %vm1406, 1, 0
        %v1408 = vadd.s32 %v1404, %v1400
        %v1409 = vadd.s32 %v1405, %v1407
        %v1410 = vadd.s32 %v1409, %v1399
        %v1411 = vadd.s32 %v1410, %v1401
        %v1412 = vand.u32 %v1389, 65535
        %v1413 = vshrl.u32 %v1389, 16
        %v1414 = vand.u32 %v1384, 65535
        %v1415 = vshrl.u32 %v1384, 16
        %v1416 = vmul.u32 %v1412, %v1414
        %v1417 = vmul.u32 %v1412, %v1415
        %v1418 = vmul.u32 %v1413, %v1414
        %v1419 = vmul.u32 %v1413, %v1415
        %v1420 = vshll.u32 %v1417, 16
        %v1421 = vshrl.u32 %v1417, 16
        %v1422 = vshll.u32 %v1418, 16
        %v1423 = vshrl.u32 %v1418, 16
        %vm1424 = vc.u32 %v1416, %v1420
        %v1425 = vsel %vm1424, 1, 0
        %v1426 = vadd.s32 %v1416, %v1420
        %v1427 = vadd.s32 %v1419, %v1425
        %vm1428 = vc.u32 %v1426, %v1422
        %v1429 = vsel %vm1428, 1, 0
        %v1430 = vadd.s32 %v1426, %v1422
        %v1431 = vadd.s32 %v1427, %v1429
        %v1432 = vadd.s32 %v1431, %v1421
        %v1433 = vadd.s32 %v1432, %v1423
        %v1434 = vmul.u32 %v1389, %v1380
        %v1435 = vadd.s32 %v1411, %v1430
        %vm1436 = vc.u32 %v1411, %v1430
        %v1437 = vadd.s32 %v1433, 1
        %v1438 = vsel %vm1436, %v1437, %v1433
        %v1439 = vadd.s32 %v1434, %v1438
        %v1440 = vadd.s32 %v1439, 536870912
        %v1441 = vshrl.u32 %v1440, 30
        %v1442 = vshll.u32 %v1441, 30
        %v1443 = vsub.s32 %v1439, %v1442
        %vm1444 = vcmp.lt.s32.totalorder %v1443, 0
        %v1445 = vsub.s32 0, %v1443
        %v1446 = vsel %vm1444, %v1445, %v1443
        %v1447 = vclz %v1446
        %v1448 = vsub.s32 %v1447, 2
        %vm1449 = vcmp.gt.s32.totalorder 0, %v1448
        %v1450 = vsel %vm1449, 0, %v1448
        %v1451 = vsub.s32 32, %v1450
        %v1452 = vshll.u32 %v1443, %v1450
        %v1453 = vshrl.u32 %v1435, %v1451
        %v1454 = vor.u32 %v1452, %v1453
        %v1455 = vsub.s32 4294967266, %v1450
        %v1456 = vadd.s32 %v1455, 127
        %v1457 = vshll.u32 %v1456, 23
        %v1458 = vor.u32 4788187, %v1457
        %v1459 = vand.u32 2147483647, %v1458
        %v1461 = vcvt.s32.f32 %v1454
        %v1462 = vmul.f32 %v1461, %v1459
        %v1463 = vxor.u32 %v1462, 2147483648
        %v1464 = vsel %vm1343, %v1463, %v1462
        %v1465 = vsub.s32 4, %v1441
        %v1466 = vsel %vm1343, %v1465, %v1441
        %v1467 = vsel %vm1342, %v1339, %v1464
        %v1468 = vsel %vm1342, 0, %v1466
        %v1469 = vmul.f32 %v1467, %v1467
        %v1470 = vmul.f32 %v1469, -0.001358992
        %v1471 = vadd.f32 %v1470, 0.041655596
        %v1472 = vmul.f32 %v1469, %v1471
        %v1473 = vadd.f32 %v1472, -0.4999988
        %v1474 = vmul.f32 %v1469, %v1473
        %v1475 = vadd.f32 1.0, %v1474
        %v1476 = vmul.f32 %v1467, %v1467
        %v1477 = vmul.f32 %v1476, -0.00019511016
        %v1478 = vadd.f32 %v1477, 0.008332121
        %v1479 = vmul.f32 %v1476, %v1478
        %v1480 = vadd.f32 %v1479, -0.16666654
        %v1481 = vmul.f32 %v1476, %v1480
        %v1482 = vadd.f32 %v1481, 1.0
        %v1483 = vmul.f32 %v1482, %v1467
        %vm1484 = vweird.f32 %v1339
        %v1485 = vadd.s32 %v1468, 3
        %v1486 = vand.u32 %v1485, 3
        %vm1487 = vcmp.lt.s32.totalorder %v1486, 2
        %vm1488 = vcmp.eq.s32.totalorder %v1486, 0
        %v1489 = vxor.u32 %v1483, 2147483648
        %v1490 = vsel %vm1488, %v1475, %v1489
        %vm1491 = vcmp.eq.s32.totalorder %v1486, 2
        %v1492 = vxor.u32 %v1475, 2147483648
        %v1493 = vsel %vm1491, %v1492, %v1483
        %v1494 = vsel %vm1487, %v1490, %v1493
        %v1495 = vsel %vm1484, nan, %v1494
        %v1496 = vand.u32 2147483647, %v1340
        %vm1497 = vcmp.le.f32.partialorder %v1496, 0.7853982
        %vm1498 = vcmp.lt.s32.totalorder %v1340, 0
        %v1499 = vand.u32 %v1340, 2139095040
        %v1500 = vshrl.u32 %v1499, 23
        %v1501 = vsub.s32 %v1500, 127
        %v1502 = vand.u32 2147483647, %v1340
        %v1503 = vand.u32 %v1502, 8388607
        %v1504 = vor.u32 %v1503, 8388608
        %v1505 = vsub.s32 0, %v1504
        %v1506 = vadd.s32 %v1501, 1
        %vm1507 = vcmp.gt.s32.totalorder %v1506, 0
        %v1508 = vsel %vm1507, %v1506, 0
        %v1509 = vshrl.u32 %v1508, 5
        %v1510 = vand.u32 %v1508, 31
        %v1511 = vsub.s32 32, %v1510
        %v1512 = vshrl.u32 683565275, %v1511
        %v1513 = vshll.u32 683565275, %v1510
        %v1514 = vshrl.u32 2475754826, %v1511
        %v1515 = vor.u32 %v1513, %v1514
        %v1516 = vshll.u32 2475754826, %v1510
        %v1517 = vshrl.u32 2131351028, %v1511
        %v1518 = vor.u32 %v1516, %v1517
        %v1519 = vshll.u32 2131351028, %v1510
        %v1520 = vshrl.u32 2102212464, %v1511
        %v1521 = vor.u32 %v1519, %v1520
        %v1522 = vshll.u32 2102212464, %v1510
        %v1523 = vshrl.u32 920167782, %v1511
        %v1524 = vor.u32 %v1522, %v1523
        %v1525 = vshll.u32 920167782, %v1510
        %v1526 = vshrl.u32 1326507024, %v1511
        %v1527 = vor.u32 %v1525, %v1526
        %vm1528 = vcmp.lt.s32.totalorder %v1509, 1
        %vm1529 = vcmp.lt.s32.totalorder %v1509, 2
        %vm1530 = vcmp.lt.s32.totalorder %v1509, 3
        %vm1531 = vcmp.lt.s32.totalorder %v1509, 4
        %v1532 = vsel %vm1528, %v1512, %v1515
        %v1533 = vsel %vm1531, %v1521, 2102212464
        %v1534 = vsel %vm1530, %v1518, %v1533
        %v1535 = vsel %vm1529, %v1532, %v1534
        %v1536 = vsel %vm1528, %v1515, %v1518
        %v1537 = vsel %vm1531, %v1524, 920167782
        %v1538 = vsel %vm1530, %v1521, %v1537
        %v1539 = vsel %vm1529, %v1536, %v1538
        %v1540 = vsel %vm1528, %v1518, %v1521
        %v1541 = vsel %vm1531, %v1527, 1326507024
        %v1542 = vsel %vm1530, %v1524, %v1541
        %v1543 = vsel %vm1529, %v1540, %v1542
        %v1544 = vshll.u32 %v1504, 8
        %v1545 = vand.u32 %v1544, 65535
        %v1546 = vshrl.u32 %v1544, 16
        %v1547 = vand.u32 %v1543, 65535
        %v1548 = vshrl.u32 %v1543, 16
        %v1549 = vmul.u32 %v1545, %v1547
        %v1550 = vmul.u32 %v1545, %v1548
        %v1551 = vmul.u32 %v1546, %v1547
        %v1552 = vmul.u32 %v1546, %v1548
        %v1553 = vshll.u32 %v1550, 16
        %v1554 = vshrl.u32 %v1550, 16
        %v1555 = vshll.u32 %v1551, 16
        %v1556 = vshrl.u32 %v1551, 16
        %vm1557 = vc.u32 %v1549, %v1553
        %v1558 = vsel %vm1557, 1, 0
        %v1559 = vadd.s32 %v1549, %v1553
        %v1560 = vadd.s32 %v1552, %v1558
        %vm1561 = vc.u32 %v1559, %v1555
        %v1562 = vsel %vm1561, 1, 0
        %v1563 = vadd.s32 %v1559, %v1555
        %v1564 = vadd.s32 %v1560, %v1562
        %v1565 = vadd.s32 %v1564, %v1554
        %v1566 = vadd.s32 %v1565, %v1556
        %v1567 = vand.u32 %v1544, 65535
        %v1568 = vshrl.u32 %v1544, 16
        %v1569 = vand.u32 %v1539, 65535
        %v1570 = vshrl.u32 %v1539, 16
        %v1571 = vmul.u32 %v1567, %v1569
        %v1572 = vmul.u32 %v1567, %v1570
        %v1573 = vmul.u32 %v1568, %v1569
        %v1574 = vmul.u32 %v1568, %v1570
        %v1575 = vshll.u32 %v1572, 16
        %v1576 = vshrl.u32 %v1572, 16
        %v1577 = vshll.u32 %v1573, 16
        %v1578 = vshrl.u32 %v1573, 16
        %vm1579 = vc.u32 %v1571, %v1575
        %v1580 = vsel %vm1579, 1, 0
        %v1581 = vadd.s32 %v1571, %v1575
        %v1582 = vadd.s32 %v1574, %v1580
        %vm1583 = vc.u32 %v1581, %v1577
        %v1584 = vsel %vm1583, 1, 0
        %v1585 = vadd.s32 %v1581, %v1577
        %v1586 = vadd.s32 %v1582, %v1584
        %v1587 = vadd.s32 %v1586, %v1576
        %v1588 = vadd.s32 %v1587, %v1578
        %v1589 = vmul.u32 %v1544, %v1535
        %v1590 = vadd.s32 %v1566, %v1585
        %vm1591 = vc.u32 %v1566, %v1585
        %v1592 = vadd.s32 %v1588, 1
        %v1593 = vsel %vm1591, %v1592, %v1588
        %v1594 = vadd.s32 %v1589, %v1593
        %v1595 = vadd.s32 %v1594, 536870912
        %v1596 = vshrl.u32 %v1595, 30
        %v1597 = vshll.u32 %v1596, 30
        %v1598 = vsub.s32 %v1594, %v1597
        %vm1599 = vcmp.lt.s32.totalorder %v1598, 0
        %v1600 = vsub.s32 0, %v1598
        %v1601 = vsel %vm1599, %v1600, %v1598
        %v1602 = vclz %v1601
        %v1603 = vsub.s32 %v1602, 2
        %vm1604 = vcmp.gt.s32.totalorder 0, %v1603
        %v1605 = vsel %vm1604, 0, %v1603
        %v1606 = vsub.s32 32, %v1605
        %v1607 = vshll.u32 %v1598, %v1605
        %v1608 = vshrl.u32 %v1590, %v1606
        %v1609 = vor.u32 %v1607, %v1608
        %v1610 = vsub.s32 4294967266, %v1605
        %v1611 = vadd.s32 %v1610, 127
        %v1612 = vshll.u32 %v1611, 23
        %v1613 = vor.u32 4788187, %v1612
        %v1614 = vand.u32 2147483647, %v1613
        %v1616 = vcvt.s32.f32 %v1609
        %v1617 = vmul.f32 %v1616, %v1614
        %v1618 = vxor.u32 %v1617, 2147483648
        %v1619 = vsel %vm1498, %v1618, %v1617
        %v1620 = vsub.s32 4, %v1596
        %v1621 = vsel %vm1498, %v1620, %v1596
        %v1622 = vsel %vm1497, %v1340, %v1619
        %v1623 = vsel %vm1497, 0, %v1621
        %v1624 = vmul.f32 %v1622, %v1622
        %v1625 = vmul.f32 %v1624, -0.001358992
        %v1626 = vadd.f32 %v1625, 0.041655596
        %v1627 = vmul.f32 %v1624, %v1626
        %v1628 = vadd.f32 %v1627, -0.4999988
        %v1629 = vmul.f32 %v1624, %v1628
        %v1630 = vadd.f32 1.0, %v1629
        %v1631 = vmul.f32 %v1622, %v1622
        %v1632 = vmul.f32 %v1631, -0.00019511016
        %v1633 = vadd.f32 %v1632, 0.008332121
        %v1634 = vmul.f32 %v1631, %v1633
        %v1635 = vadd.f32 %v1634, -0.16666654
        %v1636 = vmul.f32 %v1631, %v1635
        %v1637 = vadd.f32 %v1636, 1.0
        %v1638 = vmul.f32 %v1637, %v1622
        %vm1639 = vweird.f32 %v1340
        %v1640 = vadd.s32 %v1623, 3
        %v1641 = vand.u32 %v1640, 3
        %vm1642 = vcmp.lt.s32.totalorder %v1641, 2
        %vm1643 = vcmp.eq.s32.totalorder %v1641, 0
        %v1644 = vxor.u32 %v1638, 2147483648
        %v1645 = vsel %vm1643, %v1630, %v1644
        %vm1646 = vcmp.eq.s32.totalorder %v1641, 2
        %v1647 = vxor.u32 %v1630, 2147483648
        %v1648 = vsel %vm1646, %v1647, %v1638
        %v1649 = vsel %vm1642, %v1645, %v1648
        %v1650 = vsel %vm1639, nan, %v1649
        %v1651 = vmul.f32 %v1337, %v379
        %v1652 = vmul.f32 %v1338, %v379
        %v1653 = vand.u32 2147483647, %v1651
        %vm1654 = vcmp.le.f32.partialorder %v1653, 0.7853982
        %vm1655 = vcmp.lt.s32.totalorder %v1651, 0
        %v1656 = vand.u32 %v1651, 2139095040
        %v1657 = vshrl.u32 %v1656, 23
        %v1658 = vsub.s32 %v1657, 127
        %v1659 = vand.u32 2147483647, %v1651
        %v1660 = vand.u32 %v1659, 8388607
        %v1661 = vor.u32 %v1660, 8388608
        %v1662 = vsub.s32 0, %v1661
        %v1663 = vadd.s32 %v1658, 1
        %vm1664 = vcmp.gt.s32.totalorder %v1663, 0
        %v1665 = vsel %vm1664, %v1663, 0
        %v1666 = vshrl.u32 %v1665, 5
        %v1667 = vand.u32 %v1665, 31
        %v1668 = vsub.s32 32, %v1667
        %v1669 = vshrl.u32 683565275, %v1668
        %v1670 = vshll.u32 683565275, %v1667
        %v1671 = vshrl.u32 2475754826, %v1668
        %v1672 = vor.u32 %v1670, %v1671
        %v1673 = vshll.u32 2475754826, %v1667
        %v1674 = vshrl.u32 2131351028, %v1668
        %v1675 = vor.u32 %v1673, %v1674
        %v1676 = vshll.u32 2131351028, %v1667
        %v1677 = vshrl.u32 2102212464, %v1668
        %v1678 = vor.u32 %v1676, %v1677
        %v1679 = vshll.u32 2102212464, %v1667
        %v1680 = vshrl.u32 920167782, %v1668
        %v1681 = vor.u32 %v1679, %v1680
        %v1682 = vshll.u32 920167782, %v1667
        %v1683 = vshrl.u32 1326507024, %v1668
        %v1684 = vor.u32 %v1682, %v1683
        %vm1685 = vcmp.lt.s32.totalorder %v1666, 1
        %vm1686 = vcmp.lt.s32.totalorder %v1666, 2
        %vm1687 = vcmp.lt.s32.totalorder %v1666, 3
        %vm1688 = vcmp.lt.s32.totalorder %v1666, 4
        %v1689 = vsel %vm1685, %v1669, %v1672
        %v1690 = vsel %vm1688, %v1678, 2102212464
        %v1691 = vsel %vm1687, %v1675, %v1690
        %v1692 = vsel %vm1686, %v1689, %v1691
        %v1693 = vsel %vm1685, %v1672, %v1675
        %v1694 = vsel %vm1688, %v1681, 920167782
        %v1695 = vsel %vm1687, %v1678, %v1694
        %v1696 = vsel %vm1686, %v1693, %v1695
        %v1697 = vsel %vm1685, %v1675, %v1678
        %v1698 = vsel %vm1688, %v1684, 1326507024
        %v1699 = vsel %vm1687, %v1681, %v1698
        %v1700 = vsel %vm1686, %v1697, %v1699
        %v1701 = vshll.u32 %v1661, 8
        %v1702 = vand.u32 %v1701, 65535
        %v1703 = vshrl.u32 %v1701, 16
        %v1704 = vand.u32 %v1700, 65535
        %v1705 = vshrl.u32 %v1700, 16
        %v1706 = vmul.u32 %v1702, %v1704
        %v1707 = vmul.u32 %v1702, %v1705
        %v1708 = vmul.u32 %v1703, %v1704
        %v1709 = vmul.u32 %v1703, %v1705
        %v1710 = vshll.u32 %v1707, 16
        %v1711 = vshrl.u32 %v1707, 16
        %v1712 = vshll.u32 %v1708, 16
        %v1713 = vshrl.u32 %v1708, 16
        %vm1714 = vc.u32 %v1706, %v1710
        %v1715 = vsel %vm1714, 1, 0
        %v1716 = vadd.s32 %v1706, %v1710
        %v1717 = vadd.s32 %v1709, %v1715
        %vm1718 = vc.u32 %v1716, %v1712
        %v1719 = vsel %vm1718, 1, 0
        %v1720 = vadd.s32 %v1716, %v1712
        %v1721 = vadd.s32 %v1717, %v1719
        %v1722 = vadd.s32 %v1721, %v1711
        %v1723 = vadd.s32 %v1722, %v1713
        %v1724 = vand.u32 %v1701, 65535
        %v1725 = vshrl.u32 %v1701, 16
        %v1726 = vand.u32 %v1696, 65535
        %v1727 = vshrl.u32 %v1696, 16
        %v1728 = vmul.u32 %v1724, %v1726
        %v1729 = vmul.u32 %v1724, %v1727
        %v1730 = vmul.u32 %v1725, %v1726
        %v1731 = vmul.u32 %v1725, %v1727
        %v1732 = vshll.u32 %v1729, 16
        %v1733 = vshrl.u32 %v1729, 16
        %v1734 = vshll.u32 %v1730, 16
        %v1735 = vshrl.u32 %v1730, 16
        %vm1736 = vc.u32 %v1728, %v1732
        %v1737 = vsel %vm1736, 1, 0
        %v1738 = vadd.s32 %v1728, %v1732
        %v1739 = vadd.s32 %v1731, %v1737
        %vm1740 = vc.u32 %v1738, %v1734
        %v1741 = vsel %vm1740, 1, 0
        %v1742 = vadd.s32 %v1738, %v1734
        %v1743 = vadd.s32 %v1739, %v1741
        %v1744 = vadd.s32 %v1743, %v1733
        %v1745 = vadd.s32 %v1744, %v1735
        %v1746 = vmul.u32 %v1701, %v1692
        %v1747 = vadd.s32 %v1723, %v1742
        %vm1748 = vc.u32 %v1723, %v1742
        %v1749 = vadd.s32 %v1745, 1
        %v1750 = vsel %vm1748, %v1749, %v1745
        %v1751 = vadd.s32 %v1746, %v1750
        %v1752 = vadd.s32 %v1751, 536870912
        %v1753 = vshrl.u32 %v1752, 30
        %v1754 = vshll.u32 %v1753, 30
        %v1755 = vsub.s32 %v1751, %v1754
        %vm1756 = vcmp.lt.s32.totalorder %v1755, 0
        %v1757 = vsub.s32 0, %v1755
        %v1758 = vsel %vm1756, %v1757, %v1755
        %v1759 = vclz %v1758
        %v1760 = vsub.s32 %v1759, 2
        %vm1761 = vcmp.gt.s32.totalorder 0, %v1760
        %v1762 = vsel %vm1761, 0, %v1760
        %v1763 = vsub.s32 32, %v1762
        %v1764 = vshll.u32 %v1755, %v1762
        %v1765 = vshrl.u32 %v1747, %v1763
        %v1766 = vor.u32 %v1764, %v1765
        %v1767 = vsub.s32 4294967266, %v1762
        %v1768 = vadd.s32 %v1767, 127
        %v1769 = vshll.u32 %v1768, 23
        %v1770 = vor.u32 4788187, %v1769
        %v1771 = vand.u32 2147483647, %v1770
        %v1773 = vcvt.s32.f32 %v1766
        %v1774 = vmul.f32 %v1773, %v1771
        %v1775 = vxor.u32 %v1774, 2147483648
        %v1776 = vsel %vm1655, %v1775, %v1774
        %v1777 = vsub.s32 4, %v1753
        %v1778 = vsel %vm1655, %v1777, %v1753
        %v1779 = vsel %vm1654, %v1651, %v1776
        %v1780 = vsel %vm1654, 0, %v1778
        %v1781 = vmul.f32 %v1779, %v1779
        %v1782 = vmul.f32 %v1781, -0.001358992
        %v1783 = vadd.f32 %v1782, 0.041655596
        %v1784 = vmul.f32 %v1781, %v1783
        %v1785 = vadd.f32 %v1784, -0.4999988
        %v1786 = vmul.f32 %v1781, %v1785
        %v1787 = vadd.f32 1.0, %v1786
        %v1788 = vmul.f32 %v1779, %v1779
        %v1789 = vmul.f32 %v1788, -0.00019511016
        %v1790 = vadd.f32 %v1789, 0.008332121
        %v1791 = vmul.f32 %v1788, %v1790
        %v1792 = vadd.f32 %v1791, -0.16666654
        %v1793 = vmul.f32 %v1788, %v1792
        %v1794 = vadd.f32 %v1793, 1.0
        %v1795 = vmul.f32 %v1794, %v1779
        %vm1796 = vweird.f32 %v1651
        %v1797 = vadd.s32 %v1780, 3
        %v1798 = vand.u32 %v1797, 3
        %vm1799 = vcmp.lt.s32.totalorder %v1798, 2
        %vm1800 = vcmp.eq.s32.totalorder %v1798, 0
        %v1801 = vxor.u32 %v1795, 2147483648
        %v1802 = vsel %vm1800, %v1787, %v1801
        %vm1803 = vcmp.eq.s32.totalorder %v1798, 2
        %v1804 = vxor.u32 %v1787, 2147483648
        %v1805 = vsel %vm1803, %v1804, %v1795
        %v1806 = vsel %vm1799, %v1802, %v1805
        %v1807 = vsel %vm1796, nan, %v1806
        %v1808 = vand.u32 2147483647, %v1652
        %vm1809 = vcmp.le.f32.partialorder %v1808, 0.7853982
        %vm1810 = vcmp.lt.s32.totalorder %v1652, 0
        %v1811 = vand.u32 %v1652, 2139095040
        %v1812 = vshrl.u32 %v1811, 23
        %v1813 = vsub.s32 %v1812, 127
        %v1814 = vand.u32 2147483647, %v1652
        %v1815 = vand.u32 %v1814, 8388607
        %v1816 = vor.u32 %v1815, 8388608
        %v1817 = vsub.s32 0, %v1816
        %v1818 = vadd.s32 %v1813, 1
        %vm1819 = vcmp.gt.s32.totalorder %v1818, 0
        %v1820 = vsel %vm1819, %v1818, 0
        %v1821 = vshrl.u32 %v1820, 5
        %v1822 = vand.u32 %v1820, 31
        %v1823 = vsub.s32 32, %v1822
        %v1824 = vshrl.u32 683565275, %v1823
        %v1825 = vshll.u32 683565275, %v1822
        %v1826 = vshrl.u32 2475754826, %v1823
        %v1827 = vor.u32 %v1825, %v1826
        %v1828 = vshll.u32 2475754826, %v1822
        %v1829 = vshrl.u32 2131351028, %v1823
        %v1830 = vor.u32 %v1828, %v1829
        %v1831 = vshll.u32 2131351028, %v1822
        %v1832 = vshrl.u32 2102212464, %v1823
        %v1833 = vor.u32 %v1831, %v1832
        %v1834 = vshll.u32 2102212464, %v1822
        %v1835 = vshrl.u32 920167782, %v1823
        %v1836 = vor.u32 %v1834, %v1835
        %v1837 = vshll.u32 920167782, %v1822
        %v1838 = vshrl.u32 1326507024, %v1823
        %v1839 = vor.u32 %v1837, %v1838
        %vm1840 = vcmp.lt.s32.totalorder %v1821, 1
        %vm1841 = vcmp.lt.s32.totalorder %v1821, 2
        %vm1842 = vcmp.lt.s32.totalorder %v1821, 3
        %vm1843 = vcmp.lt.s32.totalorder %v1821, 4
        %v1844 = vsel %vm1840, %v1824, %v1827
        %v1845 = vsel %vm1843, %v1833, 2102212464
        %v1846 = vsel %vm1842, %v1830, %v1845
        %v1847 = vsel %vm1841, %v1844, %v1846
        %v1848 = vsel %vm1840, %v1827, %v1830
        %v1849 = vsel %vm1843, %v1836, 920167782
        %v1850 = vsel %vm1842, %v1833, %v1849
        %v1851 = vsel %vm1841, %v1848, %v1850
        %v1852 = vsel %vm1840, %v1830, %v1833
        %v1853 = vsel %vm1843, %v1839, 1326507024
        %v1854 = vsel %vm1842, %v1836, %v1853
        %v1855 = vsel %vm1841, %v1852, %v1854
        %v1856 = vshll.u32 %v1816, 8
        %v1857 = vand.u32 %v1856, 65535
        %v1858 = vshrl.u32 %v1856, 16
        %v1859 = vand.u32 %v1855, 65535
        %v1860 = vshrl.u32 %v1855, 16
        %v1861 = vmul.u32 %v1857, %v1859
        %v1862 = vmul.u32 %v1857, %v1860
        %v1863 = vmul.u32 %v1858, %v1859
        %v1864 = vmul.u32 %v1858, %v1860
        %v1865 = vshll.u32 %v1862, 16
        %v1866 = vshrl.u32 %v1862, 16
        %v1867 = vshll.u32 %v1863, 16
        %v1868 = vshrl.u32 %v1863, 16
        %vm1869 = vc.u32 %v1861, %v1865
        %v1870 = vsel %vm1869, 1, 0
        %v1871 = vadd.s32 %v1861, %v1865
        %v1872 = vadd.s32 %v1864, %v1870
        %vm1873 = vc.u32 %v1871, %v1867
        %v1874 = vsel %vm1873, 1, 0
        %v1875 = vadd.s32 %v1871, %v1867
        %v1876 = vadd.s32 %v1872, %v1874
        %v1877 = vadd.s32 %v1876, %v1866
        %v1878 = vadd.s32 %v1877, %v1868
        %v1879 = vand.u32 %v1856, 65535
        %v1880 = vshrl.u32 %v1856, 16
        %v1881 = vand.u32 %v1851, 65535
        %v1882 = vshrl.u32 %v1851, 16
        %v1883 = vmul.u32 %v1879, %v1881
        %v1884 = vmul.u32 %v1879, %v1882
        %v1885 = vmul.u32 %v1880, %v1881
        %v1886 = vmul.u32 %v1880, %v1882
        %v1887 = vshll.u32 %v1884, 16
        %v1888 = vshrl.u32 %v1884, 16
        %v1889 = vshll.u32 %v1885, 16
        %v1890 = vshrl.u32 %v1885, 16
        %vm1891 = vc.u32 %v1883, %v1887
        %v1892 = vsel %vm1891, 1, 0
        %v1893 = vadd.s32 %v1883, %v1887
        %v1894 = vadd.s32 %v1886, %v1892
        %vm1895 = vc.u32 %v1893, %v1889
        %v1896 = vsel %vm1895, 1, 0
        %v1897 = vadd.s32 %v1893, %v1889
        %v1898 = vadd.s32 %v1894, %v1896
        %v1899 = vadd.s32 %v1898, %v1888
        %v1900 = vadd.s32 %v1899, %v1890
        %v1901 = vmul.u32 %v1856, %v1847
        %v1902 = vadd.s32 %v1878, %v1897
        %vm1903 = vc.u32 %v1878, %v1897
        %v1904 = vadd.s32 %v1900, 1
        %v1905 = vsel %vm1903, %v1904, %v1900
        %v1906 = vadd.s32 %v1901, %v1905
        %v1907 = vadd.s32 %v1906, 536870912
        %v1908 = vshrl.u32 %v1907, 30
        %v1909 = vshll.u32 %v1908, 30
        %v1910 = vsub.s32 %v1906, %v1909
        %vm1911 = vcmp.lt.s32.totalorder %v1910, 0
        %v1912 = vsub.s32 0, %v1910
        %v1913 = vsel %vm1911, %v1912, %v1910
        %v1914 = vclz %v1913
        %v1915 = vsub.s32 %v1914, 2
        %vm1916 = vcmp.gt.s32.totalorder 0, %v1915
        %v1917 = vsel %vm1916, 0, %v1915
        %v1918 = vsub.s32 32, %v1917
        %v1919 = vshll.u32 %v1910, %v1917
        %v1920 = vshrl.u32 %v1902, %v1918
        %v1921 = vor.u32 %v1919, %v1920
        %v1922 = vsub.s32 4294967266, %v1917
        %v1923 = vadd.s32 %v1922, 127
        %v1924 = vshll.u32 %v1923, 23
        %v1925 = vor.u32 4788187, %v1924
        %v1926 = vand.u32 2147483647, %v1925
        %v1928 = vcvt.s32.f32 %v1921
        %v1929 = vmul.f32 %v1928, %v1926
        %v1930 = vxor.u32 %v1929, 2147483648
        %v1931 = vsel %vm1810, %v1930, %v1929
        %v1932 = vsub.s32 4, %v1908
        %v1933 = vsel %vm1810, %v1932, %v1908
        %v1934 = vsel %vm1809, %v1652, %v1931
        %v1935 = vsel %vm1809, 0, %v1933
        %v1936 = vmul.f32 %v1934, %v1934
        %v1937 = vmul.f32 %v1936, -0.001358992
        %v1938 = vadd.f32 %v1937, 0.041655596
        %v1939 = vmul.f32 %v1936, %v1938
        %v1940 = vadd.f32 %v1939, -0.4999988
        %v1941 = vmul.f32 %v1936, %v1940
        %v1942 = vadd.f32 1.0, %v1941
        %v1943 = vmul.f32 %v1934, %v1934
        %v1944 = vmul.f32 %v1943, -0.00019511016
        %v1945 = vadd.f32 %v1944, 0.008332121
        %v1946 = vmul.f32 %v1943, %v1945
        %v1947 = vadd.f32 %v1946, -0.16666654
        %v1948 = vmul.f32 %v1943, %v1947
        %v1949 = vadd.f32 %v1948, 1.0
        %v1950 = vmul.f32 %v1949, %v1934
        %vm1951 = vweird.f32 %v1652
        %v1952 = vadd.s32 %v1935, 3
        %v1953 = vand.u32 %v1952, 3
        %vm1954 = vcmp.lt.s32.totalorder %v1953, 2
        %vm1955 = vcmp.eq.s32.totalorder %v1953, 0
        %v1956 = vxor.u32 %v1950, 2147483648
        %v1957 = vsel %vm1955, %v1942, %v1956
        %vm1958 = vcmp.eq.s32.totalorder %v1953, 2
        %v1959 = vxor.u32 %v1942, 2147483648
        %v1960 = vsel %vm1958, %v1959, %v1950
        %v1961 = vsel %vm1954, %v1957, %v1960
        %v1962 = vsel %vm1951, nan, %v1961
        %v1963 = vmul.f32 %v1008, %v1495
        %v1964 = vmul.f32 %v1008, %v1650
        %v1965 = vmul.f32 %v1963, %v1495
        %v1966 = vmul.f32 %v1964, %v1650
        %v1967 = vadd.f32 %v1326, %v1965
        %v1968 = vadd.f32 %v1327, %v1966
        %v1969 = vmul.f32 %v1008, %v1807
        %v1970 = vmul.f32 %v1008, %v1962
        %v1971 = vmul.f32 %v1969, %v1807
        %v1972 = vmul.f32 %v1970, %v1962
        %v1973 = vadd.f32 %v1337, %v1971
        %v1974 = vadd.f32 %v1338, %v1972
        %1976 = vset.pattern.permute.xlu0 7
        %1977 = vperm.xlu0 %1976, %v1967
        %v1978 = vpop.permute.xlu0 %1977
        %1981 = vset.pattern.permute.xlu0 7
        %1982 = vperm.xlu0 %1981, %v1974
        %v1983 = vpop.permute.xlu0 %1982
        %1986 = vrot.lane.b32.xlu0 %v1967, 123
        %v1987 = vpop.permute.xlu0 %1986
        %1988 = vrot.lane.b32.xlu0 %v1968, 123
        %v1989 = vpop.permute.xlu0 %1988
        %v1990 = vsel %vm1037, %v1987, %v1989
        %v1993 = vsel %vm297, %v1978, %v1990
        %v1994 = vsel %vm297, %v1989, %v1983
        %1996 = vrot.lane.b32.xlu0 %v1973, 123
        %v1997 = vpop.permute.xlu0 %1996
        %1998 = vrot.lane.b32.xlu0 %v1974, 123
        %v1999 = vpop.permute.xlu0 %1998
        %v2000 = vsel %vm1037, %v1997, %v1999
        %v2003 = vsel %vm320, %v1978, %v2000
        %v2004 = vsel %vm320, %v1999, %v1983
        %v2005 = vmul.f32 %v1993, 0.009389464
        %v2006 = vmul.f32 %v2003, 0.0020289666
        %v2007 = vadd.f32 %v2005, %v2006
        %v2008 = vmul.f32 %v1993, -0.057657376
        %v2009 = vmul.f32 %v1994, -0.057657376
        %2012 = vrot.lane.b32.xlu0 %v2008, 127
        %v2013 = vpop.permute.xlu0 %2012
        %2014 = vrot.lane.b32.xlu0 %v2009, 127
        %v2015 = vpop.permute.xlu0 %2014
        %v2016 = vsel %vm1064, %v2013, %v2015
        %v2018 = vadd.f32 %v2007, %v2016
        %v2019 = vmul.f32 %v2003, -0.025543464
        %v2020 = vmul.f32 %v2004, -0.025543464
        %2023 = vrot.lane.b32.xlu0 %v2019, 127
        %v2024 = vpop.permute.xlu0 %2023
        %2025 = vrot.lane.b32.xlu0 %v2020, 127
        %v2026 = vpop.permute.xlu0 %2025
        %v2027 = vsel %vm1064, %v2024, %v2026
        %v2029 = vadd.f32 %v2018, %v2027
        %v2030 = vmul.f32 %v1993, 0.4432098
        %v2031 = vmul.f32 %v1994, 0.4432098
        %2034 = vrot.lane.b32.xlu0 %v2030, 126
        %v2035 = vpop.permute.xlu0 %2034
        %2036 = vrot.lane.b32.xlu0 %v2031, 126
        %v2037 = vpop.permute.xlu0 %2036
        %v2038 = vsel %vm1087, %v2035, %v2037
        %v2040 = vadd.f32 %v2029, %v2038
        %v2041 = vmul.f32 %v2003, 0.12857261
        %v2042 = vmul.f32 %v2004, 0.12857261
        %2045 = vrot.lane.b32.xlu0 %v2041, 126
        %v2046 = vpop.permute.xlu0 %2045
        %2047 = vrot.lane.b32.xlu0 %v2042, 126
        %v2048 = vpop.permute.xlu0 %2047
        %v2049 = vsel %vm1087, %v2046, %v2048
        %v2051 = vadd.f32 %v2040, %v2049
        %v2052 = vmul.f32 %v1993, 0.12857261
        %v2053 = vmul.f32 %v1994, 0.12857261
        %2056 = vrot.lane.b32.xlu0 %v2052, 125
        %v2057 = vpop.permute.xlu0 %2056
        %2058 = vrot.lane.b32.xlu0 %v2053, 125
        %v2059 = vpop.permute.xlu0 %2058
        %v2060 = vsel %vm1110, %v2057, %v2059
        %v2062 = vadd.f32 %v2051, %v2060
        %v2063 = vmul.f32 %v2003, 0.4432098
        %v2064 = vmul.f32 %v2004, 0.4432098
        %2067 = vrot.lane.b32.xlu0 %v2063, 125
        %v2068 = vpop.permute.xlu0 %2067
        %2069 = vrot.lane.b32.xlu0 %v2064, 125
        %v2070 = vpop.permute.xlu0 %2069
        %v2071 = vsel %vm1110, %v2068, %v2070
        %v2073 = vadd.f32 %v2062, %v2071
        %v2074 = vmul.f32 %v1993, -0.025543464
        %v2075 = vmul.f32 %v1994, -0.025543464
        %2078 = vrot.lane.b32.xlu0 %v2074, 124
        %v2079 = vpop.permute.xlu0 %2078
        %2080 = vrot.lane.b32.xlu0 %v2075, 124
        %v2081 = vpop.permute.xlu0 %2080
        %v2082 = vsel %vm1133, %v2079, %v2081
        %v2084 = vadd.f32 %v2073, %v2082
        %v2085 = vmul.f32 %v2003, -0.057657376
        %v2086 = vmul.f32 %v2004, -0.057657376
        %2089 = vrot.lane.b32.xlu0 %v2085, 124
        %v2090 = vpop.permute.xlu0 %2089
        %2091 = vrot.lane.b32.xlu0 %v2086, 124
        %v2092 = vpop.permute.xlu0 %2091
        %v2093 = vsel %vm1133, %v2090, %v2092
        %v2095 = vadd.f32 %v2084, %v2093
        %v2096 = vmul.f32 %v1993, 0.0020289666
        %v2097 = vmul.f32 %v1994, 0.0020289666
        %2100 = vrot.lane.b32.xlu0 %v2096, 123
        %v2101 = vpop.permute.xlu0 %2100
        %2102 = vrot.lane.b32.xlu0 %v2097, 123
        %v2103 = vpop.permute.xlu0 %2102
        %v2104 = vsel %vm1037, %v2101, %v2103
        %v2106 = vadd.f32 %v2095, %v2104
        %v2107 = vmul.f32 %v2003, 0.009389464
        %v2108 = vmul.f32 %v2004, 0.009389464
        %2111 = vrot.lane.b32.xlu0 %v2107, 123
        %v2112 = vpop.permute.xlu0 %2111
        %2113 = vrot.lane.b32.xlu0 %v2108, 123
        %v2114 = vpop.permute.xlu0 %2113
        %v2115 = vsel %vm1037, %v2112, %v2114
        %v2117 = vadd.f32 %v2106, %v2115
        %2119 = vrot.lane.b32.xlu0 %v2117, 3
        %v2120 = vpop.permute.xlu0 %2119
        %v2122 = vsel %vm320, 0.0, %v2120
        %2123 = vrot.lane.b32.xlu0 %v2117, 125
        %v2124 = vpop.permute.xlu0 %2123
        %v2126 = vsel %vm1110, %v2124, 0.0
        %s2127 = scalar_lea.vmem %s3, 8
        %v2128 = vld [vmem:[%s2127] sm:$0xff]
        %s2129 = scalar_lea.vmem %s4, 8
        %v2130 = vld [vmem:[%s2129] sm:$0xff]
        %2132 = vset.pattern.permute.xlu0 0
        %2133 = vperm.xlu0 %2132, %v2130
        %v2134 = vpop.permute.xlu0 %2133
        %v2137 = vsel %vm1186, %v2128, 0
        %2139 = vmatpush.msra.mxu0 0.0
        %2140 = vmatpush.msra.mxu0 0.0
        %2141 = vmatpush.msra.mxu0 0.0
        %2142 = vmatpush.msra.mxu0 0.0
        %2143 = vmatpush.msra.mxu0 0.0
        %2144 = vmatpush.msra.mxu0 0.0
        %2145 = vmatpush.msra.mxu0 0.0
        %2146 = vmatpush.msra.mxu0 0.0
        %2147 = vmatpush.msra.mxu0 0.0
        %2148 = vmatpush.msra.mxu0 0.0
        %2149 = vmatpush.msra.mxu0 0.0
        %2150 = vmatpush.msra.mxu0 0.0
        %2151 = vmatpush.msra.mxu0 0.0
        %2152 = vmatpush.msra.mxu0 %v2126
        %2153 = vmatpush.msra.mxu0 %v2117
        %2154 = vmatpush.msra.mxu0 %v2122
        %2155 = vmatmul.f32.gmra.mxu0 %v2137
        %v2156 = vpop.f32.mrf.mxu0
        %v2157 = vadd.f32 %v2134, %v2156
        %2158 = vdwg.mxu0
        %v2159 = vadd.f32 %v1210, %v2157
        %2160 = vst [vmem:[%s215] sm:$0xff] %v2159
        %s2161 = sand.u32 %s137, 1
        %s2162 = scalar_lea.sflag [#allocation3], %s2161
        %s2163 = sand.u32 %s137, 1
        %s2164 = smul.addr %s2163, 8
        %s2165 = scalar_lea.vmem [#allocation2], %s2164
        // Predicated region
        $region41: #{tpu_custom_call.1} parent=39 // pred_check
          %p2166 = pneg %p147
        $region42: #{tpu_custom_call.1} parent=39 // pred_check_branch
          %2168 = sbr.rel (%p2166) target = $region44
        $region43: #{tpu_custom_call.1} parent=39 // pred_region
          %2170 = vsyncadd %s2162, 0
          %s2171 = smul.addr %s19, 8
          %s2172 = scalar_lea.hbm %s5, %s2171
          %s2174 = sshll.u32 %s2165, 4
          %s2175 = int_to_ptr.vmem [resolvable:$true] %s2174
          %s2176 = sshll.u32 %s2172, 4
          %s2177 = int_to_ptr.hbm [resolvable:$true] %s2176
          %2179 = dma.vmem_to_hbm [thread:$0]  %s2175, 128, %s2177, %s2162
        $region44: #{tpu_custom_call.1} parent=39 // pred_fallthru
          _
      $region40: #{tpu_custom_call.1} parent=5 // pred_fallthru
        _
      %p2180 = scmp.le.s32.totalorder 2, %s14
      // Predicated region
      $region45: #{tpu_custom_call.1} parent=5 // pred_check
        %p2181 = pneg %p2180
      $region46: #{tpu_custom_call.1} parent=5 // pred_check_branch
        %2183 = sbr.rel (%p2181) target = $region48
      $region47: #{tpu_custom_call.1} parent=5 // pred_region
        %s2184 = ssub.s32 %s14, 2
        // Predicated region
        $region49: #{tpu_custom_call.1} parent=47 // pred_check
          %p2185 = pneg %p153
        $region50: #{tpu_custom_call.1} parent=47 // pred_check_branch
          %2187 = sbr.rel (%p2185) target = $region52
        $region51: #{tpu_custom_call.1} parent=47 // pred_region
          %s2188 = sand.u32 %s138, 1
          %s2189 = scalar_lea.sflag [#allocation3], %s2188
          %s2190 = sand.u32 %s138, 1
          %s2191 = smul.addr %s2190, 8
          %s2192 = scalar_lea.vmem [#allocation2], %s2191
          %2194 = dma.done %s2189, 128
        $region52: #{tpu_custom_call.1} parent=47 // pred_fallthru
          _
      $region48: #{tpu_custom_call.1} parent=5 // pred_fallthru
        _
    $region6: #{tpu_custom_call.1} parent=1 // loop_footer
      %s18 = sadd.s32 1, %s14
    $region7: #{tpu_custom_call.1} parent=1 // loop_footer_branch
      %13 = sbr.rel target = $region3
    $region8: #{tpu_custom_call.1} parent=1 // loop_exit
      _
    %2195 = vsyncpa [#allocation3], 1
    %s2196 = scalar_lea.sflag [#allocation3], 1
    %2197 = vsyncpa %s2196, 1

</llo_original>
